<compile_context>
chip_gen: v5e
topology: v5e:2x2
jax: 0.10.0
libtpu: 0.0.40
codegen_flags: <defaults>
</compile_context>

<pallas_src>
import functools

import jax
import jax.numpy as jnp
from jax import lax
from jax.experimental import pallas as pl
from jax.experimental.pallas import tpu as pltpu

LANE = 128          # TPU lane width: every feature dim is padded to this
BATCH_TILE = 128    # sentences per grid step (fills the MXU M dimension)


def _pad_to(x, axis, size):
    pad = size - x.shape[axis]
    if pad <= 0:
        return x
    widths = [(0, 0)] * x.ndim
    widths[axis] = (0, pad)
    return jnp.pad(x, widths)


def _round_up(n, m):
    return ((n + m - 1) // m) * m


def ffnn_kernel(ids_ref, emb_ref, vwT_ref, vb_ref, wwT_ref, wb_ref, o_ref,
                *, num_classes, inv_seq):
    # ids_ref : [TB, seq]  int32 word ids for TB sentences (one grid step)
    # emb_ref : [Vp, Ip]   zero-padded embedding table   (VMEM-resident, constant index map)
    # vwT_ref : [Ip, Hp]   V.weight.T, zero-padded        (resident)
    # vb_ref  : [1,  Hp]   V.bias, zero-padded            (resident)
    # wwT_ref : [Hp, Op]   W.weight.T, zero-padded        (resident)
    # wb_ref  : [1,  Op]   W.bias, zero-padded            (resident)
    # o_ref   : [TB, Op]   log-probabilities (first num_classes lanes valid)
    tb, seq = ids_ref.shape
    vp = emb_ref.shape[0]

    ids = ids_ref[...]                                               # [TB, seq] int32
    vocab_iota = lax.broadcasted_iota(jnp.int32, (tb, vp), 1)        # [TB, Vp]

    # Bag-of-words counts (handles repeated words); cheap VPU compares, seq is small & static.
    counts = jnp.zeros((tb, vp), jnp.float32)
    for s in range(seq):
        counts = counts + (ids[:, s:s + 1] == vocab_iota).astype(jnp.float32)

    # Mean pool on the MXU:  (counts @ table) / seq  ==  mean of gathered embedding rows.
    x = jnp.dot(counts, emb_ref[...],
                preferred_element_type=jnp.float32) * inv_seq        # [TB, Ip]

    # h = ReLU(V x + b)
    h = jnp.dot(x, vwT_ref[...], preferred_element_type=jnp.float32) + vb_ref[...]
    h = jnp.maximum(h, 0.0)                                          # [TB, Hp]

    # logits = W h + b
    logits = jnp.dot(h, wwT_ref[...], preferred_element_type=jnp.float32) + wb_ref[...]

    # Mask padded class lanes before the stable log-softmax (otherwise the lse is wrong).
    lane = lax.broadcasted_iota(jnp.int32, logits.shape, 1)
    logits = jnp.where(lane < num_classes, logits, -1e30)

    m = jnp.max(logits, axis=-1, keepdims=True)
    lse = jnp.log(jnp.sum(jnp.exp(logits - m), axis=-1, keepdims=True)) + m
    o_ref[...] = (logits - lse).astype(o_ref.dtype)


def prepare_params(emb_table, V_w, V_b, W_w, W_b):
    """One-time setup: transpose + zero-pad all parameters to lane width.

    Done once at init (not per forward call), so there are no per-call weight
    transposes / extra HBM copies.
    """
    vocab, inp = emb_table.shape
    hid = V_w.shape[0]
    out = W_w.shape[0]
    vp = _round_up(max(vocab, LANE), LANE)
    ip = _round_up(max(inp, LANE), LANE)
    hp = _round_up(max(hid, LANE), LANE)
    op = _round_up(max(out, LANE), LANE)

    emb_p = _pad_to(_pad_to(emb_table.astype(jnp.float32), 0, vp), 1, ip)
    vwT_p = _pad_to(_pad_to(V_w.T.astype(jnp.float32), 0, ip), 1, hp)
    vb_p = _pad_to(V_b.astype(jnp.float32).reshape(1, hid), 1, hp)
    wwT_p = _pad_to(_pad_to(W_w.T.astype(jnp.float32), 0, hp), 1, op)
    wb_p = _pad_to(W_b.astype(jnp.float32).reshape(1, out), 1, op)
    return dict(emb=emb_p, vwT=vwT_p, vb=vb_p, wwT=wwT_p, wb=wb_p, out_dim=out)


def ffnn_forward(params, word_ids):
    """word_ids: [B, seq] int32 word indices (one row per sentence).

    Returns [B, out] log-probabilities (one FFNN forward per sentence).
    """
    B, seq = word_ids.shape
    emb, vwT, vb, wwT, wb = (params["emb"], params["vwT"], params["vb"],
                             params["wwT"], params["wb"])
    out = params["out_dim"]
    vp, ip = emb.shape
    hp = vwT.shape[1]
    op = wwT.shape[1]

    tb = BATCH_TILE
    bp = _round_up(B, tb)
    ids = word_ids.astype(jnp.int32)
    if bp != B:
        ids = jnp.pad(ids, ((0, bp - B), (0, 0)))
    nb = bp // tb

    kernel = functools.partial(ffnn_kernel, num_classes=out, inv_seq=1.0 / seq)

    def const(shape):
        # Same block every grid step -> weights / table stay resident in VMEM (no re-DMA).
        return pl.BlockSpec(shape, lambda b: (0,) * len(shape))

    logprobs = pl.pallas_call(
        kernel,
        out_shape=jax.ShapeDtypeStruct((bp, op), jnp.float32),
        grid_spec=pltpu.PrefetchScalarGridSpec(
            num_scalar_prefetch=0,
            grid=(nb,),
            in_specs=[
                pl.BlockSpec((tb, seq), lambda b: (b, 0)),   # word ids: tiled over batch
                const((vp, ip)),                             # embedding table (resident)
                const((ip, hp)),                             # V.weight.T      (resident)
                const((1, hp)),                              # V.bias
                const((hp, op)),                             # W.weight.T      (resident)
                const((1, op)),                              # W.bias
            ],
            out_specs=pl.BlockSpec((tb, op), lambda b: (b, 0)),
        ),
        compiler_params=pltpu.CompilerParams(
            dimension_semantics=("parallel",),               # shard batch tiles across TCs (v7x)
        ),
    )(ids, emb, vwT, vb, wwT, wb)

    return logprobs[:B, :out]


def xavier_uniform(key, shape):
    fan_out, fan_in = shape          # nn.Linear weight is [out_features, in_features]
    bound = jnp.sqrt(6.0 / (fan_in + fan_out))
    return jax.random.uniform(key, shape, jnp.float32, -bound, bound)


def linear_bias_init(key, fan_in, size):
    bound = 1.0 / jnp.sqrt(jnp.float32(fan_in))
    return jax.random.uniform(key, (size,), jnp.float32, -bound, bound)


if __name__ == "__main__":
    # Small, deterministic synthetic setup.
    inp, hid, out = 32, 32, 8        # embedding dim, hidden, num classes
    vocab, seq, batch = 16, 8, 256   # synthetic vocabulary, sentence length, #sentences

    key = jax.random.PRNGKey(0)
    k_emb, k_vw, k_vb, k_ww, k_wb, k_idx = jax.random.split(key, 6)

    # Synthetic word-embedding table (stands in for WordEmbeddings).
    emb_table = jax.random.normal(k_emb, (vocab, inp), jnp.float32)

    # Parameters (Xavier-uniform weights, default nn.Linear bias init).
    V_w = xavier_uniform(k_vw, (hid, inp))
    V_b = linear_bias_init(k_vb, inp, hid)
    W_w = xavier_uniform(k_ww, (out, hid))
    W_b = linear_bias_init(k_wb, hid, out)

    # A batch of deterministic "sentences": word indices (the string->id lookup is host glue).
    word_ids = jax.random.randint(k_idx, (batch, seq), 0, vocab)

    params = prepare_params(emb_table, V_w, V_b, W_w, W_b)
    logprobs = jax.block_until_ready(ffnn_forward(params, word_ids))

    # Pure-JAX reference (one FFNN forward per sentence).
    x_ref = jnp.mean(emb_table[word_ids], axis=1)                    # [B, inp]
    h_ref = jnp.maximum(x_ref @ V_w.T + V_b, 0.0)
    logits_ref = h_ref @ W_w.T + W_b
    ref = jax.nn.log_softmax(logits_ref, axis=-1)

    assert logprobs.shape == (batch, out)
    assert jnp.allclose(logprobs, ref, atol=1e-4), float(jnp.max(jnp.abs(logprobs - ref)))

    print("KERNEL_OK")
</pallas_src>

<mosaic_0001>
module attributes {stable_mosaic.version = 11 : i64} {
  func.func @ffnn_kernel(%arg0: i32, %arg1: memref<128x8xi32, #tpu.memory_space<vmem>>, %arg2: memref<128x128xf32, #tpu.memory_space<vmem>>, %arg3: memref<128x128xf32, #tpu.memory_space<vmem>>, %arg4: memref<1x128xf32, #tpu.memory_space<vmem>>, %arg5: memref<128x128xf32, #tpu.memory_space<vmem>>, %arg6: memref<1x128xf32, #tpu.memory_space<vmem>>, %arg7: memref<128x128xf32, #tpu.memory_space<vmem>>) attributes {dimension_semantics = [#tpu.dimension_semantics<parallel>], iteration_bounds = array<i64: 2>, scalar_prefetch = 0 : i64, scratch_operands = 0 : i64, tpu.core_type = #tpu.core_type<tc>, window_params = [{transform_indices = @transform_0, window_bounds = array<i64: 128, 8>}, {pipeline_mode = #tpu.pipeline_mode<synchronous>, transform_indices = @transform_1, window_bounds = array<i64: 128, 128>}, {pipeline_mode = #tpu.pipeline_mode<synchronous>, transform_indices = @transform_2, window_bounds = array<i64: 128, 128>}, {pipeline_mode = #tpu.pipeline_mode<synchronous>, transform_indices = @transform_3, window_bounds = array<i64: 1, 128>}, {pipeline_mode = #tpu.pipeline_mode<synchronous>, transform_indices = @transform_4, window_bounds = array<i64: 128, 128>}, {pipeline_mode = #tpu.pipeline_mode<synchronous>, transform_indices = @transform_5, window_bounds = array<i64: 1, 128>}, {transform_indices = @transform_6, window_bounds = array<i64: 128, 128>}]} {
    %c0 = arith.constant 0 : index
    %c0_0 = arith.constant 0 : index
    %0 = vector.load %arg1[%c0, %c0_0] : memref<128x8xi32, #tpu.memory_space<vmem>>, vector<128x8xi32>
    %1 = tpu.iota {dimensions = array<i32: 1>} : vector<128x128xi32>
    %cst = arith.constant 0.000000e+00 : f32
    %2 = vector.broadcast %cst : f32 to vector<128x128xf32>
    %3 = vector.extract_strided_slice %0 {offsets = [0, 0], sizes = [128, 1], strides = [1, 1]} : vector<128x8xi32> to vector<128x1xi32>
    %4 = vector.broadcast %3 : vector<128x1xi32> to vector<128x128xi32>
    %5 = arith.cmpi eq, %4, %1 : vector<128x128xi32>
    %6 = arith.extui %5 : vector<128x128xi1> to vector<128x128xi32>
    %7 = arith.sitofp %6 : vector<128x128xi32> to vector<128x128xf32>
    %8 = arith.addf %2, %7 : vector<128x128xf32>
    %9 = vector.extract_strided_slice %0 {offsets = [0, 1], sizes = [128, 1], strides = [1, 1]} : vector<128x8xi32> to vector<128x1xi32>
    %10 = vector.broadcast %9 : vector<128x1xi32> to vector<128x128xi32>
    %11 = arith.cmpi eq, %10, %1 : vector<128x128xi32>
    %12 = arith.extui %11 : vector<128x128xi1> to vector<128x128xi32>
    %13 = arith.sitofp %12 : vector<128x128xi32> to vector<128x128xf32>
    %14 = arith.addf %8, %13 : vector<128x128xf32>
    %15 = vector.extract_strided_slice %0 {offsets = [0, 2], sizes = [128, 1], strides = [1, 1]} : vector<128x8xi32> to vector<128x1xi32>
    %16 = vector.broadcast %15 : vector<128x1xi32> to vector<128x128xi32>
    %17 = arith.cmpi eq, %16, %1 : vector<128x128xi32>
    %18 = arith.extui %17 : vector<128x128xi1> to vector<128x128xi32>
    %19 = arith.sitofp %18 : vector<128x128xi32> to vector<128x128xf32>
    %20 = arith.addf %14, %19 : vector<128x128xf32>
    %21 = vector.extract_strided_slice %0 {offsets = [0, 3], sizes = [128, 1], strides = [1, 1]} : vector<128x8xi32> to vector<128x1xi32>
    %22 = vector.broadcast %21 : vector<128x1xi32> to vector<128x128xi32>
    %23 = arith.cmpi eq, %22, %1 : vector<128x128xi32>
    %24 = arith.extui %23 : vector<128x128xi1> to vector<128x128xi32>
    %25 = arith.sitofp %24 : vector<128x128xi32> to vector<128x128xf32>
    %26 = arith.addf %20, %25 : vector<128x128xf32>
    %27 = vector.extract_strided_slice %0 {offsets = [0, 4], sizes = [128, 1], strides = [1, 1]} : vector<128x8xi32> to vector<128x1xi32>
    %28 = vector.broadcast %27 : vector<128x1xi32> to vector<128x128xi32>
    %29 = arith.cmpi eq, %28, %1 : vector<128x128xi32>
    %30 = arith.extui %29 : vector<128x128xi1> to vector<128x128xi32>
    %31 = arith.sitofp %30 : vector<128x128xi32> to vector<128x128xf32>
    %32 = arith.addf %26, %31 : vector<128x128xf32>
    %33 = vector.extract_strided_slice %0 {offsets = [0, 5], sizes = [128, 1], strides = [1, 1]} : vector<128x8xi32> to vector<128x1xi32>
    %34 = vector.broadcast %33 : vector<128x1xi32> to vector<128x128xi32>
    %35 = arith.cmpi eq, %34, %1 : vector<128x128xi32>
    %36 = arith.extui %35 : vector<128x128xi1> to vector<128x128xi32>
    %37 = arith.sitofp %36 : vector<128x128xi32> to vector<128x128xf32>
    %38 = arith.addf %32, %37 : vector<128x128xf32>
    %39 = vector.extract_strided_slice %0 {offsets = [0, 6], sizes = [128, 1], strides = [1, 1]} : vector<128x8xi32> to vector<128x1xi32>
    %40 = vector.broadcast %39 : vector<128x1xi32> to vector<128x128xi32>
    %41 = arith.cmpi eq, %40, %1 : vector<128x128xi32>
    %42 = arith.extui %41 : vector<128x128xi1> to vector<128x128xi32>
    %43 = arith.sitofp %42 : vector<128x128xi32> to vector<128x128xf32>
    %44 = arith.addf %38, %43 : vector<128x128xf32>
    %45 = vector.extract_strided_slice %0 {offsets = [0, 7], sizes = [128, 1], strides = [1, 1]} : vector<128x8xi32> to vector<128x1xi32>
    %46 = vector.broadcast %45 : vector<128x1xi32> to vector<128x128xi32>
    %47 = arith.cmpi eq, %46, %1 : vector<128x128xi32>
    %48 = arith.extui %47 : vector<128x128xi1> to vector<128x128xi32>
    %49 = arith.sitofp %48 : vector<128x128xi32> to vector<128x128xf32>
    %50 = arith.addf %44, %49 : vector<128x128xf32>
    %c0_1 = arith.constant 0 : index
    %c0_2 = arith.constant 0 : index
    %51 = vector.load %arg2[%c0_1, %c0_2] : memref<128x128xf32, #tpu.memory_space<vmem>>, vector<128x128xf32>
    %cst_3 = arith.constant dense<0.000000e+00> : vector<128x128xf32>
    %52 = tpu.matmul %50, %51, %cst_3 {dimension_numbers = #tpu.dot_dimension_numbers<[1], [0], [0], [1], [0, 0, 1, 1], [], []>} : vector<128x128xf32>, vector<128x128xf32>, vector<128x128xf32> -> vector<128x128xf32>
    %cst_4 = arith.constant 1.250000e-01 : f32
    %53 = vector.broadcast %cst_4 : f32 to vector<128x128xf32>
    %54 = arith.mulf %52, %53 : vector<128x128xf32>
    %c0_5 = arith.constant 0 : index
    %c0_6 = arith.constant 0 : index
    %55 = vector.load %arg3[%c0_5, %c0_6] : memref<128x128xf32, #tpu.memory_space<vmem>>, vector<128x128xf32>
    %cst_7 = arith.constant dense<0.000000e+00> : vector<128x128xf32>
    %56 = tpu.matmul %54, %55, %cst_7 {dimension_numbers = #tpu.dot_dimension_numbers<[1], [0], [0], [1], [0, 0, 1, 1], [], []>} : vector<128x128xf32>, vector<128x128xf32>, vector<128x128xf32> -> vector<128x128xf32>
    %c0_8 = arith.constant 0 : index
    %c0_9 = arith.constant 0 : index
    %57 = vector.load %arg4[%c0_8, %c0_9] : memref<1x128xf32, #tpu.memory_space<vmem>>, vector<1x128xf32>
    %58 = vector.broadcast %57 : vector<1x128xf32> to vector<128x128xf32>
    %59 = arith.addf %56, %58 : vector<128x128xf32>
    %cst_10 = arith.constant 0.000000e+00 : f32
    %60 = vector.broadcast %cst_10 : f32 to vector<128x128xf32>
    %61 = arith.maximumf %59, %60 : vector<128x128xf32>
    %c0_11 = arith.constant 0 : index
    %c0_12 = arith.constant 0 : index
    %62 = vector.load %arg5[%c0_11, %c0_12] : memref<128x128xf32, #tpu.memory_space<vmem>>, vector<128x128xf32>
    %cst_13 = arith.constant dense<0.000000e+00> : vector<128x128xf32>
    %63 = tpu.matmul %61, %62, %cst_13 {dimension_numbers = #tpu.dot_dimension_numbers<[1], [0], [0], [1], [0, 0, 1, 1], [], []>} : vector<128x128xf32>, vector<128x128xf32>, vector<128x128xf32> -> vector<128x128xf32>
    %c0_14 = arith.constant 0 : index
    %c0_15 = arith.constant 0 : index
    %64 = vector.load %arg6[%c0_14, %c0_15] : memref<1x128xf32, #tpu.memory_space<vmem>>, vector<1x128xf32>
    %65 = vector.broadcast %64 : vector<1x128xf32> to vector<128x128xf32>
    %66 = arith.addf %63, %65 : vector<128x128xf32>
    %67 = tpu.iota {dimensions = array<i32: 1>} : vector<128x128xi32>
    %c8_i32 = arith.constant 8 : i32
    %68 = vector.broadcast %c8_i32 : i32 to vector<128x128xi32>
    %69 = arith.cmpi slt, %67, %68 : vector<128x128xi32>
    %cst_16 = arith.constant -1.000000e+30 : f32
    %70 = vector.broadcast %cst_16 : f32 to vector<128x128xf32>
    %71 = arith.select %69, %66, %70 : vector<128x128xi1>, vector<128x128xf32>
    %cst_17 = arith.constant dense<0xFF800000> : vector<128xf32>
    %72 = vector.multi_reduction <maximumf>, %71, %cst_17 [1] : vector<128x128xf32> to vector<128xf32>
    %73 = vector.shape_cast %72 : vector<128xf32> to vector<128x1xf32>
    %74 = vector.broadcast %73 : vector<128x1xf32> to vector<128x128xf32>
    %75 = arith.subf %71, %74 : vector<128x128xf32>
    %76 = math.exp %75 : vector<128x128xf32>
    %cst_18 = arith.constant dense<0.000000e+00> : vector<128xf32>
    %77 = vector.multi_reduction <add>, %76, %cst_18 [1] : vector<128x128xf32> to vector<128xf32>
    %78 = vector.shape_cast %77 : vector<128xf32> to vector<128x1xf32>
    %79 = math.log %78 : vector<128x1xf32>
    %80 = arith.addf %79, %73 : vector<128x1xf32>
    %81 = vector.broadcast %80 : vector<128x1xf32> to vector<128x128xf32>
    %82 = arith.subf %71, %81 : vector<128x128xf32>
    %c0_19 = arith.constant 0 : index
    %c0_20 = arith.constant 0 : index
    %83 = vector.load %arg7[%c0_19, %c0_20] : memref<128x128xf32, #tpu.memory_space<vmem>>, vector<128x128xf32>
    tpu.vector_store %arg7[%c0_19, %c0_20], %82 {strides = array<i32>} : memref<128x128xf32, #tpu.memory_space<vmem>>, vector<128x128xf32>,
    return
  }
  func.func @transform_0(%arg0: i32) -> (i32, i32) {
    %c0_i32 = arith.constant 0 : i32
    %c0_i32_0 = arith.constant 0 : i32
    return %arg0, %c0_i32 : i32, i32
  }
  func.func @transform_1(%arg0: i32) -> (i32, i32) {
    %c0_i32 = arith.constant 0 : i32
    %c0_i32_0 = arith.constant 0 : i32
    %c0_i32_1 = arith.constant 0 : i32
    return %c0_i32, %c0_i32_0 : i32, i32
  }
  func.func @transform_2(%arg0: i32) -> (i32, i32) {
    %c0_i32 = arith.constant 0 : i32
    %c0_i32_0 = arith.constant 0 : i32
    %c0_i32_1 = arith.constant 0 : i32
    return %c0_i32, %c0_i32_0 : i32, i32
  }
  func.func @transform_3(%arg0: i32) -> (i32, i32) {
    %c0_i32 = arith.constant 0 : i32
    %c0_i32_0 = arith.constant 0 : i32
    %c0_i32_1 = arith.constant 0 : i32
    return %c0_i32, %c0_i32_0 : i32, i32
  }
  func.func @transform_4(%arg0: i32) -> (i32, i32) {
    %c0_i32 = arith.constant 0 : i32
    %c0_i32_0 = arith.constant 0 : i32
    %c0_i32_1 = arith.constant 0 : i32
    return %c0_i32, %c0_i32_0 : i32, i32
  }
  func.func @transform_5(%arg0: i32) -> (i32, i32) {
    %c0_i32 = arith.constant 0 : i32
    %c0_i32_0 = arith.constant 0 : i32
    %c0_i32_1 = arith.constant 0 : i32
    return %c0_i32, %c0_i32_0 : i32, i32
  }
  func.func @transform_6(%arg0: i32) -> (i32, i32) {
    %c0_i32 = arith.constant 0 : i32
    %c0_i32_0 = arith.constant 0 : i32
    return %arg0, %c0_i32 : i32, i32
  }
}

</mosaic_0001>

<llo_original>
// kernel: tpu_custom_call.1
$region0: #{tpu_custom_call.1}
  #allocation0 [shape = 'u32[]', space=smem, size = 0x4, offset = 0x4, fixed_abs, tag = 'smem constant byte address 0x4 - core index']
  #allocation1 [shape = 'u32[72,128]{1,0:T(1,128)}', space=vmem, size = 0x9000, scoped, tag = 'internal scratch']
  %s0 = inlined_call_operand.vmem [shape: s32[256,8], index: 0, kind: input, shape index: {}]
  %s1 = inlined_call_operand.vmem [shape: f32[128,128], index: 1, kind: input, shape index: {}]
  %s2 = inlined_call_operand.vmem [shape: f32[128,128], index: 2, kind: input, shape index: {}]
  %s3 = inlined_call_operand.vmem [shape: f32[1,128], index: 3, kind: input, shape index: {}]
  %s4 = inlined_call_operand.hbm [shape: f32[128,128], index: 4, kind: input, shape index: {}]
  %s5 = inlined_call_operand.vmem [shape: f32[1,128], index: 5, kind: input, shape index: {}]
  %s6 = inlined_call_operand.hbm [shape: f32[256,128], index: 6, kind: output, shape index: {}]
  %s7 = sld [smem:[#allocation0]]
  $region61: #{tpu_custom_call.1} parent=0
    _
  %s9 = ssub.s32 1, %s7
  %s10 = scalar_select 0, %s9, %s7
  $region1: #{tpu_custom_call.1} parent=0
    #allocation2 [shape = 'u8[65536]{0}', space=vmem, size = 0x10000, scoped, tag = 'input window, operand 4, single buffered']
    #allocation3 [shape = 's32[2]{0}', space=sflag, size = 0x8, scoped, tag = 'scoped memory for tpu_custom_call.1']
    #allocation4 [shape = 's32[2]{0}', space=sflag, size = 0x8, scoped, tag = 'scoped memory for tpu_custom_call.1']
    #allocation5 [shape = 'u8[131072]{0}', space=vmem, size = 0x20000, scoped, tag = 'output window, operand 0']
    %11 = vsyncpa [#allocation3], 0
    %12 = vsyncpa [#allocation4], 0
    %s13 = scalar_lea.sflag [#allocation4], 1
    %14 = vsyncpa %s13, 0
    loop: start=0, step=1, limit=4
    $region2: #{tpu_custom_call.1} parent=1 // loop_pre_header
      _
    $region3: #{tpu_custom_call.1} parent=1 // loop_header
      %s16 = sphi 0, %s20
      %p17 = scmp.ge.s32.totalorder %s16, 4
      %s26 = sphi 0, %s28
      %s29 = sphi 0, %s26
      %s30 = sphi 0, %s29
      %s46 = sphi 0, %s30
      %s50 = sphi 0, %s50
      %s52 = sphi 0, %s50
      %s53 = sphi 0, %s52
      %s67 = sphi 0, %s53
      %s71 = sphi 0, %s71
      %s73 = sphi 0, %s71
      %s74 = sphi 0, %s73
      %s88 = sphi 0, %s74
      %s92 = sphi 0, %s92
      %s94 = sphi 0, %s92
      %s95 = sphi 0, %s94
      %s109 = sphi 0, %s95
      %s113 = sphi 0, %s113
      %s115 = sphi 0, %s113
      %s116 = sphi 0, %s115
      %s130 = sphi 0, %s116
      %s134 = sphi 0, %s134
      %s136 = sphi 0, %s134
      %s137 = sphi 0, %s136
      %s151 = sphi 0, %s137
      %s157 = sphi 0, %s159
      %s160 = sphi 0, %s157
      %s161 = sphi 0, %s160
      %s177 = sphi 0, %s161
    $region4: #{tpu_custom_call.1} parent=1 // loop_header_branch
      %19 = sbr.rel (%p17) target = $region8
    $region5: #{tpu_custom_call.1} parent=1 // loop_body
      %s21 = ssub.s32 %s16, 1
      %s22 = ssub.s32 %s16, 2
      %s23 = sadd.s32 %s16, 1
      %s24 = ssub.s32 %s16, %s23
      %p25 = scmp.eq.s32.totalorder %s24, 0
      %s27 = sadd.s32 %s26, 1
      %s28 = scalar_select %p25, %s26, %s27
      %p31 = pneg %p25
      %p32 = scmp.eq.s32.totalorder %s16, 1
      %p33 = por %p31, %p32
      %p34 = scmp.ne.s32.totalorder %s26, %s29
      %p35 = scmp.eq.s32.totalorder %s16, 0
      %p36 = por %p34, %p35
      %p37 = scmp.ne.s32.totalorder %s26, %s29
      %p38 = scmp.eq.s32.totalorder %s21, 1
      %p39 = por %p37, %p38
      %p40 = scmp.ne.s32.totalorder %s29, %s30
      %p41 = scmp.eq.s32.totalorder %s21, 0
      %p42 = por %p40, %p41
      %p43 = scmp.ne.s32.totalorder %s29, %s30
      %p44 = scmp.eq.s32.totalorder %s22, 1
      %p45 = por %p43, %p44
      %p47 = scmp.ne.s32.totalorder %s30, %s46
      %p48 = scmp.eq.s32.totalorder %s22, 0
      %p49 = por %p47, %p48
      %s51 = sadd.s32 %s50, 1
      %p54 = scmp.eq.s32.totalorder %s16, 1
      %p55 = scmp.ne.s32.totalorder %s50, %s52
      %p56 = scmp.eq.s32.totalorder %s16, 0
      %p57 = por %p55, %p56
      %p58 = scmp.ne.s32.totalorder %s50, %s52
      %p59 = scmp.eq.s32.totalorder %s21, 1
      %p60 = por %p58, %p59
      %p61 = scmp.ne.s32.totalorder %s52, %s53
      %p62 = scmp.eq.s32.totalorder %s21, 0
      %p63 = por %p61, %p62
      %p64 = scmp.ne.s32.totalorder %s52, %s53
      %p65 = scmp.eq.s32.totalorder %s22, 1
      %p66 = por %p64, %p65
      %p68 = scmp.ne.s32.totalorder %s53, %s67
      %p69 = scmp.eq.s32.totalorder %s22, 0
      %p70 = por %p68, %p69
      %s72 = sadd.s32 %s71, 1
      %p75 = scmp.eq.s32.totalorder %s16, 1
      %p76 = scmp.ne.s32.totalorder %s71, %s73
      %p77 = scmp.eq.s32.totalorder %s16, 0
      %p78 = por %p76, %p77
      %p79 = scmp.ne.s32.totalorder %s71, %s73
      %p80 = scmp.eq.s32.totalorder %s21, 1
      %p81 = por %p79, %p80
      %p82 = scmp.ne.s32.totalorder %s73, %s74
      %p83 = scmp.eq.s32.totalorder %s21, 0
      %p84 = por %p82, %p83
      %p85 = scmp.ne.s32.totalorder %s73, %s74
      %p86 = scmp.eq.s32.totalorder %s22, 1
      %p87 = por %p85, %p86
      %p89 = scmp.ne.s32.totalorder %s74, %s88
      %p90 = scmp.eq.s32.totalorder %s22, 0
      %p91 = por %p89, %p90
      %s93 = sadd.s32 %s92, 1
      %p96 = scmp.eq.s32.totalorder %s16, 1
      %p97 = scmp.ne.s32.totalorder %s92, %s94
      %p98 = scmp.eq.s32.totalorder %s16, 0
      %p99 = por %p97, %p98
      %p100 = scmp.ne.s32.totalorder %s92, %s94
      %p101 = scmp.eq.s32.totalorder %s21, 1
      %p102 = por %p100, %p101
      %p103 = scmp.ne.s32.totalorder %s94, %s95
      %p104 = scmp.eq.s32.totalorder %s21, 0
      %p105 = por %p103, %p104
      %p106 = scmp.ne.s32.totalorder %s94, %s95
      %p107 = scmp.eq.s32.totalorder %s22, 1
      %p108 = por %p106, %p107
      %p110 = scmp.ne.s32.totalorder %s95, %s109
      %p111 = scmp.eq.s32.totalorder %s22, 0
      %p112 = por %p110, %p111
      %s114 = sadd.s32 %s113, 1
      %p117 = scmp.eq.s32.totalorder %s16, 1
      %p118 = scmp.ne.s32.totalorder %s113, %s115
      %p119 = scmp.eq.s32.totalorder %s16, 0
      %p120 = por %p118, %p119
      %p121 = scmp.ne.s32.totalorder %s113, %s115
      %p122 = scmp.eq.s32.totalorder %s21, 1
      %p123 = por %p121, %p122
      %p124 = scmp.ne.s32.totalorder %s115, %s116
      %p125 = scmp.eq.s32.totalorder %s21, 0
      %p126 = por %p124, %p125
      %p127 = scmp.ne.s32.totalorder %s115, %s116
      %p128 = scmp.eq.s32.totalorder %s22, 1
      %p129 = por %p127, %p128
      %p131 = scmp.ne.s32.totalorder %s116, %s130
      %p132 = scmp.eq.s32.totalorder %s22, 0
      %p133 = por %p131, %p132
      %s135 = sadd.s32 %s134, 1
      %p138 = scmp.eq.s32.totalorder %s16, 1
      %p139 = scmp.ne.s32.totalorder %s134, %s136
      %p140 = scmp.eq.s32.totalorder %s16, 0
      %p141 = por %p139, %p140
      %p142 = scmp.ne.s32.totalorder %s134, %s136
      %p143 = scmp.eq.s32.totalorder %s21, 1
      %p144 = por %p142, %p143
      %p145 = scmp.ne.s32.totalorder %s136, %s137
      %p146 = scmp.eq.s32.totalorder %s21, 0
      %p147 = por %p145, %p146
      %p148 = scmp.ne.s32.totalorder %s136, %s137
      %p149 = scmp.eq.s32.totalorder %s22, 1
      %p150 = por %p148, %p149
      %p152 = scmp.ne.s32.totalorder %s137, %s151
      %p153 = scmp.eq.s32.totalorder %s22, 0
      %p154 = por %p152, %p153
      %s155 = ssub.s32 %s16, %s23
      %p156 = scmp.eq.s32.totalorder %s155, 0
      %s158 = sadd.s32 %s157, 1
      %s159 = scalar_select %p156, %s157, %s158
      %p162 = pneg %p156
      %p163 = scmp.eq.s32.totalorder %s16, 1
      %p164 = por %p162, %p163
      %p165 = scmp.ne.s32.totalorder %s157, %s160
      %p166 = scmp.eq.s32.totalorder %s16, 0
      %p167 = por %p165, %p166
      %p168 = scmp.ne.s32.totalorder %s157, %s160
      %p169 = scmp.eq.s32.totalorder %s21, 1
      %p170 = por %p168, %p169
      %p171 = scmp.ne.s32.totalorder %s160, %s161
      %p172 = scmp.eq.s32.totalorder %s21, 0
      %p173 = por %p171, %p172
      %p174 = scmp.ne.s32.totalorder %s160, %s161
      %p175 = scmp.eq.s32.totalorder %s22, 1
      %p176 = por %p174, %p175
      %p178 = scmp.ne.s32.totalorder %s161, %s177
      %p179 = scmp.eq.s32.totalorder %s22, 0
      %p180 = por %p178, %p179
      %p181 = scmp.le.s32.totalorder 1, %s16
      %p182 = scmp.lt.s32.totalorder %s16, 3
      %p183 = pnand %p181, %p182
      %p184 = pneg %p183
      // Predicated region
      $region9: #{tpu_custom_call.1} parent=5 // pred_check
        _
      $region10: #{tpu_custom_call.1} parent=5 // pred_check_branch
        %186 = sbr.rel (%p183) target = $region12
      $region11: #{tpu_custom_call.1} parent=5 // pred_region
        %s187 = ssub.s32 %s16, 1
        // Predicated region
        $region13: #{tpu_custom_call.1} parent=11 // pred_check
          %p188 = pneg %p63
        $region14: #{tpu_custom_call.1} parent=11 // pred_check_branch
          %190 = sbr.rel (%p188) target = $region16
        $region15: #{tpu_custom_call.1} parent=11 // pred_region
          _
        $region16: #{tpu_custom_call.1} parent=11 // pred_fallthru
          _
        // Predicated region
        $region17: #{tpu_custom_call.1} parent=11 // pred_check
          %p191 = pneg %p84
        $region18: #{tpu_custom_call.1} parent=11 // pred_check_branch
          %193 = sbr.rel (%p191) target = $region20
        $region19: #{tpu_custom_call.1} parent=11 // pred_region
          _
        $region20: #{tpu_custom_call.1} parent=11 // pred_fallthru
          _
        // Predicated region
        $region21: #{tpu_custom_call.1} parent=11 // pred_check
          %p194 = pneg %p105
        $region22: #{tpu_custom_call.1} parent=11 // pred_check_branch
          %196 = sbr.rel (%p194) target = $region24
        $region23: #{tpu_custom_call.1} parent=11 // pred_region
          _
        $region24: #{tpu_custom_call.1} parent=11 // pred_fallthru
          _
        // Predicated region
        $region25: #{tpu_custom_call.1} parent=11 // pred_check
          %p197 = pneg %p126
        $region26: #{tpu_custom_call.1} parent=11 // pred_check_branch
          %199 = sbr.rel (%p197) target = $region28
        $region27: #{tpu_custom_call.1} parent=11 // pred_region
          %201 = vsyncadd [#allocation3], 0
          %s202 = sshll.u32 %s4, 4
          %s203 = int_to_ptr.hbm [resolvable:$true] %s202
          %s204 = sshll.u32 [#allocation2], 4
          %s205 = int_to_ptr.vmem [resolvable:$true] %s204
          %210 = dma.hbm_to_vmem [thread:$0]  %s203, 2048, %s205, [#allocation3], 128, 128, 8
        $region28: #{tpu_custom_call.1} parent=11 // pred_fallthru
          _
        // Predicated region
        $region29: #{tpu_custom_call.1} parent=11 // pred_check
          %p211 = pneg %p147
        $region30: #{tpu_custom_call.1} parent=11 // pred_check_branch
          %213 = sbr.rel (%p211) target = $region32
        $region31: #{tpu_custom_call.1} parent=11 // pred_region
          _
        $region32: #{tpu_custom_call.1} parent=11 // pred_fallthru
          _
      $region12: #{tpu_custom_call.1} parent=5 // pred_fallthru
        _
      %p214 = scmp.lt.s32.totalorder %s16, 2
      // Predicated region
      $region33: #{tpu_custom_call.1} parent=5 // pred_check
        %p215 = pneg %p214
      $region34: #{tpu_custom_call.1} parent=5 // pred_check_branch
        %217 = sbr.rel (%p215) target = $region36
      $region35: #{tpu_custom_call.1} parent=5 // pred_region
        // Predicated region
        $region37: #{tpu_custom_call.1} parent=35 // pred_check
          %p218 = pneg %p36
        $region38: #{tpu_custom_call.1} parent=35 // pred_check_branch
          %220 = sbr.rel (%p218) target = $region40
        $region39: #{tpu_custom_call.1} parent=35 // pred_region
          %s221 = smul.u32 16, %s16
          %p222 = scmp.lt.s32.totalorder %s221, 31
          %s223 = scalar_select %p222, %s221, 31
          %s224 = smul.addr %s223, 8
          %s225 = scalar_lea.vmem %s0, %s224
          %s226 = smul.u32 16, %s16
        $region40: #{tpu_custom_call.1} parent=35 // pred_fallthru
          _
      $region36: #{tpu_custom_call.1} parent=5 // pred_fallthru
        _
      %p227 = scmp.le.s32.totalorder 1, %s16
      %p228 = scmp.lt.s32.totalorder %s16, 3
      %p229 = pnand %p227, %p228
      %p230 = pneg %p229
      // Predicated region
      $region41: #{tpu_custom_call.1} parent=5 // pred_check
        _
      $region42: #{tpu_custom_call.1} parent=5 // pred_check_branch
        %232 = sbr.rel (%p229) target = $region44
      $region43: #{tpu_custom_call.1} parent=5 // pred_region
        %s233 = ssub.s32 %s16, 1
        // Predicated region
        $region45: #{tpu_custom_call.1} parent=43 // pred_check
          %p234 = pneg %p126
        $region46: #{tpu_custom_call.1} parent=43 // pred_check_branch
          %236 = sbr.rel (%p234) target = $region48
        $region47: #{tpu_custom_call.1} parent=43 // pred_region
          %238 = dma.done [#allocation3], 2048
        $region48: #{tpu_custom_call.1} parent=43 // pred_fallthru
          _
        %s239 = smul.u32 16, %s21
        %p240 = scmp.lt.s32.totalorder %s239, 31
        %s241 = scalar_select %p240, %s239, 31
        %s242 = smul.addr %s241, 8
        %s243 = scalar_lea.vmem %s0, %s242
        %p244 = pneg %p42
        %p245 = pneg %p39
        %p246 = pneg %p63
        %p247 = pneg %p60
        %p248 = pneg %p84
        %p249 = pneg %p81
        %p250 = pneg %p105
        %p251 = pneg %p102
        %p252 = pneg %p126
        %p253 = pneg %p123
        %p254 = pneg %p147
        %p255 = pneg %p144
        %p256 = pneg %p173
        %p257 = pneg %p170
        %s258 = sand.u32 %s160, 1
        %s259 = scalar_lea.sflag [#allocation4], %s258
        %s260 = sand.u32 %s160, 1
        %s261 = smul.addr %s260, 128
        %s262 = scalar_lea.vmem [#allocation5], %s261
        %s263 = smul.u32 16, %s21
        %p264 = scmp.lt.s32.totalorder %s263, 31
        %s265 = scalar_select %p264, %s263, 31
        %s266 = smul.addr %s265, 8
        %s267 = scalar_lea.vmem %s0, %s266
        %s268 = smul.u32 16, %s21
        %s269 = smul.u32 16, %s21
        %v270 = vld [vmem:[%s267] sm:$0xff]
        %v271 = vld [vmem:[%s267 + $0x8] sm:$0xff]
        %v272 = vld [vmem:[%s267 + $0x10] sm:$0xff]
        %v273 = vld [vmem:[%s267 + $0x18] sm:$0xff]
        %v274 = vld [vmem:[%s267 + $0x20] sm:$0xff]
        %v275 = vld [vmem:[%s267 + $0x28] sm:$0xff]
        %v276 = vld [vmem:[%s267 + $0x30] sm:$0xff]
        %v277 = vld [vmem:[%s267 + $0x38] sm:$0xff]
        %v278 = vld [vmem:[%s267 + $0x40] sm:$0xff]
        %v279 = vld [vmem:[%s267 + $0x48] sm:$0xff]
        %v280 = vld [vmem:[%s267 + $0x50] sm:$0xff]
        %v281 = vld [vmem:[%s267 + $0x58] sm:$0xff]
        %v282 = vld [vmem:[%s267 + $0x60] sm:$0xff]
        %v283 = vld [vmem:[%s267 + $0x68] sm:$0xff]
        %v284 = vld [vmem:[%s267 + $0x70] sm:$0xff]
        %v285 = vld [vmem:[%s267 + $0x78] sm:$0xff]
        %v286 = vlaneseq
        %v287 = vand.u32 %v286, 127
        %288 = vset.pattern.permute.xlu0 0
        %289 = vperm.xlu0 %288, %v270
        %v290 = vpop.permute.xlu0 %289
        %291 = vset.pattern.permute.xlu0 0
        %292 = vperm.xlu0 %291, %v271
        %v293 = vpop.permute.xlu0 %292
        %294 = vset.pattern.permute.xlu0 0
        %295 = vperm.xlu0 %294, %v272
        %v296 = vpop.permute.xlu0 %295
        %297 = vset.pattern.permute.xlu0 0
        %298 = vperm.xlu0 %297, %v273
        %v299 = vpop.permute.xlu0 %298
        %300 = vset.pattern.permute.xlu0 0
        %301 = vperm.xlu0 %300, %v274
        %v302 = vpop.permute.xlu0 %301
        %303 = vset.pattern.permute.xlu0 0
        %304 = vperm.xlu0 %303, %v275
        %v305 = vpop.permute.xlu0 %304
        %306 = vset.pattern.permute.xlu0 0
        %307 = vperm.xlu0 %306, %v276
        %v308 = vpop.permute.xlu0 %307
        %309 = vset.pattern.permute.xlu0 0
        %310 = vperm.xlu0 %309, %v277
        %v311 = vpop.permute.xlu0 %310
        %312 = vset.pattern.permute.xlu0 0
        %313 = vperm.xlu0 %312, %v278
        %v314 = vpop.permute.xlu0 %313
        %315 = vset.pattern.permute.xlu0 0
        %316 = vperm.xlu0 %315, %v279
        %v317 = vpop.permute.xlu0 %316
        %318 = vset.pattern.permute.xlu0 0
        %319 = vperm.xlu0 %318, %v280
        %v320 = vpop.permute.xlu0 %319
        %321 = vset.pattern.permute.xlu0 0
        %322 = vperm.xlu0 %321, %v281
        %v323 = vpop.permute.xlu0 %322
        %324 = vset.pattern.permute.xlu0 0
        %325 = vperm.xlu0 %324, %v282
        %v326 = vpop.permute.xlu0 %325
        %327 = vset.pattern.permute.xlu0 0
        %328 = vperm.xlu0 %327, %v283
        %v329 = vpop.permute.xlu0 %328
        %330 = vset.pattern.permute.xlu0 0
        %331 = vperm.xlu0 %330, %v284
        %v332 = vpop.permute.xlu0 %331
        %333 = vset.pattern.permute.xlu0 0
        %334 = vperm.xlu0 %333, %v285
        %v335 = vpop.permute.xlu0 %334
        %vm336 = vcmp.eq.s32.totalorder %v290, %v287
        %vm337 = vcmp.eq.s32.totalorder %v293, %v287
        %vm338 = vcmp.eq.s32.totalorder %v296, %v287
        %vm339 = vcmp.eq.s32.totalorder %v299, %v287
        %vm340 = vcmp.eq.s32.totalorder %v302, %v287
        %vm341 = vcmp.eq.s32.totalorder %v305, %v287
        %vm342 = vcmp.eq.s32.totalorder %v308, %v287
        %vm343 = vcmp.eq.s32.totalorder %v311, %v287
        %vm344 = vcmp.eq.s32.totalorder %v314, %v287
        %vm345 = vcmp.eq.s32.totalorder %v317, %v287
        %vm346 = vcmp.eq.s32.totalorder %v320, %v287
        %vm347 = vcmp.eq.s32.totalorder %v323, %v287
        %vm348 = vcmp.eq.s32.totalorder %v326, %v287
        %vm349 = vcmp.eq.s32.totalorder %v329, %v287
        %vm350 = vcmp.eq.s32.totalorder %v332, %v287
        %vm351 = vcmp.eq.s32.totalorder %v335, %v287
        %v352 = vsel %vm336, 1, 0
        %v353 = vsel %vm337, 1, 0
        %v354 = vsel %vm338, 1, 0
        %v355 = vsel %vm339, 1, 0
        %v356 = vsel %vm340, 1, 0
        %v357 = vsel %vm341, 1, 0
        %v358 = vsel %vm342, 1, 0
        %v359 = vsel %vm343, 1, 0
        %v360 = vsel %vm344, 1, 0
        %v361 = vsel %vm345, 1, 0
        %v362 = vsel %vm346, 1, 0
        %v363 = vsel %vm347, 1, 0
        %v364 = vsel %vm348, 1, 0
        %v365 = vsel %vm349, 1, 0
        %v366 = vsel %vm350, 1, 0
        %v367 = vsel %vm351, 1, 0
        %v368 = vcvt.s32.f32 %v352
        %v369 = vcvt.s32.f32 %v353
        %v370 = vcvt.s32.f32 %v354
        %v371 = vcvt.s32.f32 %v355
        %v372 = vcvt.s32.f32 %v356
        %v373 = vcvt.s32.f32 %v357
        %v374 = vcvt.s32.f32 %v358
        %v375 = vcvt.s32.f32 %v359
        %v376 = vcvt.s32.f32 %v360
        %v377 = vcvt.s32.f32 %v361
        %v378 = vcvt.s32.f32 %v362
        %v379 = vcvt.s32.f32 %v363
        %v380 = vcvt.s32.f32 %v364
        %v381 = vcvt.s32.f32 %v365
        %v382 = vcvt.s32.f32 %v366
        %v383 = vcvt.s32.f32 %v367
        %v384 = vadd.f32 %v368, 0.0
        %v385 = vadd.f32 %v369, 0.0
        %v386 = vadd.f32 %v370, 0.0
        %v387 = vadd.f32 %v371, 0.0
        %v388 = vadd.f32 %v372, 0.0
        %v389 = vadd.f32 %v373, 0.0
        %v390 = vadd.f32 %v374, 0.0
        %v391 = vadd.f32 %v375, 0.0
        %v392 = vadd.f32 %v376, 0.0
        %v393 = vadd.f32 %v377, 0.0
        %v394 = vadd.f32 %v378, 0.0
        %v395 = vadd.f32 %v379, 0.0
        %v396 = vadd.f32 %v380, 0.0
        %v397 = vadd.f32 %v381, 0.0
        %v398 = vadd.f32 %v382, 0.0
        %v399 = vadd.f32 %v383, 0.0
        %400 = vset.pattern.permute.xlu0 1
        %401 = vperm.xlu0 %400, %v270
        %v402 = vpop.permute.xlu0 %401
        %403 = vset.pattern.permute.xlu0 1
        %404 = vperm.xlu0 %403, %v271
        %v405 = vpop.permute.xlu0 %404
        %406 = vset.pattern.permute.xlu0 1
        %407 = vperm.xlu0 %406, %v272
        %v408 = vpop.permute.xlu0 %407
        %409 = vset.pattern.permute.xlu0 1
        %410 = vperm.xlu0 %409, %v273
        %v411 = vpop.permute.xlu0 %410
        %412 = vset.pattern.permute.xlu0 1
        %413 = vperm.xlu0 %412, %v274
        %v414 = vpop.permute.xlu0 %413
        %415 = vset.pattern.permute.xlu0 1
        %416 = vperm.xlu0 %415, %v275
        %v417 = vpop.permute.xlu0 %416
        %418 = vset.pattern.permute.xlu0 1
        %419 = vperm.xlu0 %418, %v276
        %v420 = vpop.permute.xlu0 %419
        %421 = vset.pattern.permute.xlu0 1
        %422 = vperm.xlu0 %421, %v277
        %v423 = vpop.permute.xlu0 %422
        %424 = vset.pattern.permute.xlu0 1
        %425 = vperm.xlu0 %424, %v278
        %v426 = vpop.permute.xlu0 %425
        %427 = vset.pattern.permute.xlu0 1
        %428 = vperm.xlu0 %427, %v279
        %v429 = vpop.permute.xlu0 %428
        %430 = vset.pattern.permute.xlu0 1
        %431 = vperm.xlu0 %430, %v280
        %v432 = vpop.permute.xlu0 %431
        %433 = vset.pattern.permute.xlu0 1
        %434 = vperm.xlu0 %433, %v281
        %v435 = vpop.permute.xlu0 %434
        %436 = vset.pattern.permute.xlu0 1
        %437 = vperm.xlu0 %436, %v282
        %v438 = vpop.permute.xlu0 %437
        %439 = vset.pattern.permute.xlu0 1
        %440 = vperm.xlu0 %439, %v283
        %v441 = vpop.permute.xlu0 %440
        %442 = vset.pattern.permute.xlu0 1
        %443 = vperm.xlu0 %442, %v284
        %v444 = vpop.permute.xlu0 %443
        %445 = vset.pattern.permute.xlu0 1
        %446 = vperm.xlu0 %445, %v285
        %v447 = vpop.permute.xlu0 %446
        %vm448 = vcmp.eq.s32.totalorder %v402, %v287
        %vm449 = vcmp.eq.s32.totalorder %v405, %v287
        %vm450 = vcmp.eq.s32.totalorder %v408, %v287
        %vm451 = vcmp.eq.s32.totalorder %v411, %v287
        %vm452 = vcmp.eq.s32.totalorder %v414, %v287
        %vm453 = vcmp.eq.s32.totalorder %v417, %v287
        %vm454 = vcmp.eq.s32.totalorder %v420, %v287
        %vm455 = vcmp.eq.s32.totalorder %v423, %v287
        %vm456 = vcmp.eq.s32.totalorder %v426, %v287
        %vm457 = vcmp.eq.s32.totalorder %v429, %v287
        %vm458 = vcmp.eq.s32.totalorder %v432, %v287
        %vm459 = vcmp.eq.s32.totalorder %v435, %v287
        %vm460 = vcmp.eq.s32.totalorder %v438, %v287
        %vm461 = vcmp.eq.s32.totalorder %v441, %v287
        %vm462 = vcmp.eq.s32.totalorder %v444, %v287
        %vm463 = vcmp.eq.s32.totalorder %v447, %v287
        %v464 = vsel %vm448, 1, 0
        %v465 = vsel %vm449, 1, 0
        %v466 = vsel %vm450, 1, 0
        %v467 = vsel %vm451, 1, 0
        %v468 = vsel %vm452, 1, 0
        %v469 = vsel %vm453, 1, 0
        %v470 = vsel %vm454, 1, 0
        %v471 = vsel %vm455, 1, 0
        %v472 = vsel %vm456, 1, 0
        %v473 = vsel %vm457, 1, 0
        %v474 = vsel %vm458, 1, 0
        %v475 = vsel %vm459, 1, 0
        %v476 = vsel %vm460, 1, 0
        %v477 = vsel %vm461, 1, 0
        %v478 = vsel %vm462, 1, 0
        %v479 = vsel %vm463, 1, 0
        %v480 = vcvt.s32.f32 %v464
        %v481 = vcvt.s32.f32 %v465
        %v482 = vcvt.s32.f32 %v466
        %v483 = vcvt.s32.f32 %v467
        %v484 = vcvt.s32.f32 %v468
        %v485 = vcvt.s32.f32 %v469
        %v486 = vcvt.s32.f32 %v470
        %v487 = vcvt.s32.f32 %v471
        %v488 = vcvt.s32.f32 %v472
        %v489 = vcvt.s32.f32 %v473
        %v490 = vcvt.s32.f32 %v474
        %v491 = vcvt.s32.f32 %v475
        %v492 = vcvt.s32.f32 %v476
        %v493 = vcvt.s32.f32 %v477
        %v494 = vcvt.s32.f32 %v478
        %v495 = vcvt.s32.f32 %v479
        %v496 = vadd.f32 %v384, %v480
        %v497 = vadd.f32 %v385, %v481
        %v498 = vadd.f32 %v386, %v482
        %v499 = vadd.f32 %v387, %v483
        %v500 = vadd.f32 %v388, %v484
        %v501 = vadd.f32 %v389, %v485
        %v502 = vadd.f32 %v390, %v486
        %v503 = vadd.f32 %v391, %v487
        %v504 = vadd.f32 %v392, %v488
        %v505 = vadd.f32 %v393, %v489
        %v506 = vadd.f32 %v394, %v490
        %v507 = vadd.f32 %v395, %v491
        %v508 = vadd.f32 %v396, %v492
        %v509 = vadd.f32 %v397, %v493
        %v510 = vadd.f32 %v398, %v494
        %v511 = vadd.f32 %v399, %v495
        %512 = vset.pattern.permute.xlu0 2
        %513 = vperm.xlu0 %512, %v270
        %v514 = vpop.permute.xlu0 %513
        %515 = vset.pattern.permute.xlu0 2
        %516 = vperm.xlu0 %515, %v271
        %v517 = vpop.permute.xlu0 %516
        %518 = vset.pattern.permute.xlu0 2
        %519 = vperm.xlu0 %518, %v272
        %v520 = vpop.permute.xlu0 %519
        %521 = vset.pattern.permute.xlu0 2
        %522 = vperm.xlu0 %521, %v273
        %v523 = vpop.permute.xlu0 %522
        %524 = vset.pattern.permute.xlu0 2
        %525 = vperm.xlu0 %524, %v274
        %v526 = vpop.permute.xlu0 %525
        %527 = vset.pattern.permute.xlu0 2
        %528 = vperm.xlu0 %527, %v275
        %v529 = vpop.permute.xlu0 %528
        %530 = vset.pattern.permute.xlu0 2
        %531 = vperm.xlu0 %530, %v276
        %v532 = vpop.permute.xlu0 %531
        %533 = vset.pattern.permute.xlu0 2
        %534 = vperm.xlu0 %533, %v277
        %v535 = vpop.permute.xlu0 %534
        %536 = vset.pattern.permute.xlu0 2
        %537 = vperm.xlu0 %536, %v278
        %v538 = vpop.permute.xlu0 %537
        %539 = vset.pattern.permute.xlu0 2
        %540 = vperm.xlu0 %539, %v279
        %v541 = vpop.permute.xlu0 %540
        %542 = vset.pattern.permute.xlu0 2
        %543 = vperm.xlu0 %542, %v280
        %v544 = vpop.permute.xlu0 %543
        %545 = vset.pattern.permute.xlu0 2
        %546 = vperm.xlu0 %545, %v281
        %v547 = vpop.permute.xlu0 %546
        %548 = vset.pattern.permute.xlu0 2
        %549 = vperm.xlu0 %548, %v282
        %v550 = vpop.permute.xlu0 %549
        %551 = vset.pattern.permute.xlu0 2
        %552 = vperm.xlu0 %551, %v283
        %v553 = vpop.permute.xlu0 %552
        %554 = vset.pattern.permute.xlu0 2
        %555 = vperm.xlu0 %554, %v284
        %v556 = vpop.permute.xlu0 %555
        %557 = vset.pattern.permute.xlu0 2
        %558 = vperm.xlu0 %557, %v285
        %v559 = vpop.permute.xlu0 %558
        %vm560 = vcmp.eq.s32.totalorder %v514, %v287
        %vm561 = vcmp.eq.s32.totalorder %v517, %v287
        %vm562 = vcmp.eq.s32.totalorder %v520, %v287
        %vm563 = vcmp.eq.s32.totalorder %v523, %v287
        %vm564 = vcmp.eq.s32.totalorder %v526, %v287
        %vm565 = vcmp.eq.s32.totalorder %v529, %v287
        %vm566 = vcmp.eq.s32.totalorder %v532, %v287
        %vm567 = vcmp.eq.s32.totalorder %v535, %v287
        %vm568 = vcmp.eq.s32.totalorder %v538, %v287
        %vm569 = vcmp.eq.s32.totalorder %v541, %v287
        %vm570 = vcmp.eq.s32.totalorder %v544, %v287
        %vm571 = vcmp.eq.s32.totalorder %v547, %v287
        %vm572 = vcmp.eq.s32.totalorder %v550, %v287
        %vm573 = vcmp.eq.s32.totalorder %v553, %v287
        %vm574 = vcmp.eq.s32.totalorder %v556, %v287
        %vm575 = vcmp.eq.s32.totalorder %v559, %v287
        %v576 = vsel %vm560, 1, 0
        %v577 = vsel %vm561, 1, 0
        %v578 = vsel %vm562, 1, 0
        %v579 = vsel %vm563, 1, 0
        %v580 = vsel %vm564, 1, 0
        %v581 = vsel %vm565, 1, 0
        %v582 = vsel %vm566, 1, 0
        %v583 = vsel %vm567, 1, 0
        %v584 = vsel %vm568, 1, 0
        %v585 = vsel %vm569, 1, 0
        %v586 = vsel %vm570, 1, 0
        %v587 = vsel %vm571, 1, 0
        %v588 = vsel %vm572, 1, 0
        %v589 = vsel %vm573, 1, 0
        %v590 = vsel %vm574, 1, 0
        %v591 = vsel %vm575, 1, 0
        %v592 = vcvt.s32.f32 %v576
        %v593 = vcvt.s32.f32 %v577
        %v594 = vcvt.s32.f32 %v578
        %v595 = vcvt.s32.f32 %v579
        %v596 = vcvt.s32.f32 %v580
        %v597 = vcvt.s32.f32 %v581
        %v598 = vcvt.s32.f32 %v582
        %v599 = vcvt.s32.f32 %v583
        %v600 = vcvt.s32.f32 %v584
        %v601 = vcvt.s32.f32 %v585
        %v602 = vcvt.s32.f32 %v586
        %v603 = vcvt.s32.f32 %v587
        %v604 = vcvt.s32.f32 %v588
        %v605 = vcvt.s32.f32 %v589
        %v606 = vcvt.s32.f32 %v590
        %v607 = vcvt.s32.f32 %v591
        %v608 = vadd.f32 %v496, %v592
        %v609 = vadd.f32 %v497, %v593
        %v610 = vadd.f32 %v498, %v594
        %v611 = vadd.f32 %v499, %v595
        %v612 = vadd.f32 %v500, %v596
        %v613 = vadd.f32 %v501, %v597
        %v614 = vadd.f32 %v502, %v598
        %v615 = vadd.f32 %v503, %v599
        %v616 = vadd.f32 %v504, %v600
        %v617 = vadd.f32 %v505, %v601
        %v618 = vadd.f32 %v506, %v602
        %v619 = vadd.f32 %v507, %v603
        %v620 = vadd.f32 %v508, %v604
        %v621 = vadd.f32 %v509, %v605
        %v622 = vadd.f32 %v510, %v606
        %v623 = vadd.f32 %v511, %v607
        %624 = vset.pattern.permute.xlu0 3
        %625 = vperm.xlu0 %624, %v270
        %v626 = vpop.permute.xlu0 %625
        %627 = vset.pattern.permute.xlu0 3
        %628 = vperm.xlu0 %627, %v271
        %v629 = vpop.permute.xlu0 %628
        %630 = vset.pattern.permute.xlu0 3
        %631 = vperm.xlu0 %630, %v272
        %v632 = vpop.permute.xlu0 %631
        %633 = vset.pattern.permute.xlu0 3
        %634 = vperm.xlu0 %633, %v273
        %v635 = vpop.permute.xlu0 %634
        %636 = vset.pattern.permute.xlu0 3
        %637 = vperm.xlu0 %636, %v274
        %v638 = vpop.permute.xlu0 %637
        %639 = vset.pattern.permute.xlu0 3
        %640 = vperm.xlu0 %639, %v275
        %v641 = vpop.permute.xlu0 %640
        %642 = vset.pattern.permute.xlu0 3
        %643 = vperm.xlu0 %642, %v276
        %v644 = vpop.permute.xlu0 %643
        %645 = vset.pattern.permute.xlu0 3
        %646 = vperm.xlu0 %645, %v277
        %v647 = vpop.permute.xlu0 %646
        %648 = vset.pattern.permute.xlu0 3
        %649 = vperm.xlu0 %648, %v278
        %v650 = vpop.permute.xlu0 %649
        %651 = vset.pattern.permute.xlu0 3
        %652 = vperm.xlu0 %651, %v279
        %v653 = vpop.permute.xlu0 %652
        %654 = vset.pattern.permute.xlu0 3
        %655 = vperm.xlu0 %654, %v280
        %v656 = vpop.permute.xlu0 %655
        %657 = vset.pattern.permute.xlu0 3
        %658 = vperm.xlu0 %657, %v281
        %v659 = vpop.permute.xlu0 %658
        %660 = vset.pattern.permute.xlu0 3
        %661 = vperm.xlu0 %660, %v282
        %v662 = vpop.permute.xlu0 %661
        %663 = vset.pattern.permute.xlu0 3
        %664 = vperm.xlu0 %663, %v283
        %v665 = vpop.permute.xlu0 %664
        %666 = vset.pattern.permute.xlu0 3
        %667 = vperm.xlu0 %666, %v284
        %v668 = vpop.permute.xlu0 %667
        %669 = vset.pattern.permute.xlu0 3
        %670 = vperm.xlu0 %669, %v285
        %v671 = vpop.permute.xlu0 %670
        %vm672 = vcmp.eq.s32.totalorder %v626, %v287
        %vm673 = vcmp.eq.s32.totalorder %v629, %v287
        %vm674 = vcmp.eq.s32.totalorder %v632, %v287
        %vm675 = vcmp.eq.s32.totalorder %v635, %v287
        %vm676 = vcmp.eq.s32.totalorder %v638, %v287
        %vm677 = vcmp.eq.s32.totalorder %v641, %v287
        %vm678 = vcmp.eq.s32.totalorder %v644, %v287
        %vm679 = vcmp.eq.s32.totalorder %v647, %v287
        %vm680 = vcmp.eq.s32.totalorder %v650, %v287
        %vm681 = vcmp.eq.s32.totalorder %v653, %v287
        %vm682 = vcmp.eq.s32.totalorder %v656, %v287
        %vm683 = vcmp.eq.s32.totalorder %v659, %v287
        %vm684 = vcmp.eq.s32.totalorder %v662, %v287
        %vm685 = vcmp.eq.s32.totalorder %v665, %v287
        %vm686 = vcmp.eq.s32.totalorder %v668, %v287
        %vm687 = vcmp.eq.s32.totalorder %v671, %v287
        %v688 = vsel %vm672, 1, 0
        %v689 = vsel %vm673, 1, 0
        %v690 = vsel %vm674, 1, 0
        %v691 = vsel %vm675, 1, 0
        %v692 = vsel %vm676, 1, 0
        %v693 = vsel %vm677, 1, 0
        %v694 = vsel %vm678, 1, 0
        %v695 = vsel %vm679, 1, 0
        %v696 = vsel %vm680, 1, 0
        %v697 = vsel %vm681, 1, 0
        %v698 = vsel %vm682, 1, 0
        %v699 = vsel %vm683, 1, 0
        %v700 = vsel %vm684, 1, 0
        %v701 = vsel %vm685, 1, 0
        %v702 = vsel %vm686, 1, 0
        %v703 = vsel %vm687, 1, 0
        %v704 = vcvt.s32.f32 %v688
        %v705 = vcvt.s32.f32 %v689
        %v706 = vcvt.s32.f32 %v690
        %v707 = vcvt.s32.f32 %v691
        %v708 = vcvt.s32.f32 %v692
        %v709 = vcvt.s32.f32 %v693
        %v710 = vcvt.s32.f32 %v694
        %v711 = vcvt.s32.f32 %v695
        %v712 = vcvt.s32.f32 %v696
        %v713 = vcvt.s32.f32 %v697
        %v714 = vcvt.s32.f32 %v698
        %v715 = vcvt.s32.f32 %v699
        %v716 = vcvt.s32.f32 %v700
        %v717 = vcvt.s32.f32 %v701
        %v718 = vcvt.s32.f32 %v702
        %v719 = vcvt.s32.f32 %v703
        %v720 = vadd.f32 %v608, %v704
        %v721 = vadd.f32 %v609, %v705
        %v722 = vadd.f32 %v610, %v706
        %v723 = vadd.f32 %v611, %v707
        %v724 = vadd.f32 %v612, %v708
        %v725 = vadd.f32 %v613, %v709
        %v726 = vadd.f32 %v614, %v710
        %v727 = vadd.f32 %v615, %v711
        %v728 = vadd.f32 %v616, %v712
        %v729 = vadd.f32 %v617, %v713
        %v730 = vadd.f32 %v618, %v714
        %v731 = vadd.f32 %v619, %v715
        %v732 = vadd.f32 %v620, %v716
        %v733 = vadd.f32 %v621, %v717
        %v734 = vadd.f32 %v622, %v718
        %v735 = vadd.f32 %v623, %v719
        %736 = vset.pattern.permute.xlu0 4
        %737 = vperm.xlu0 %736, %v270
        %v738 = vpop.permute.xlu0 %737
        %739 = vset.pattern.permute.xlu0 4
        %740 = vperm.xlu0 %739, %v271
        %v741 = vpop.permute.xlu0 %740
        %742 = vset.pattern.permute.xlu0 4
        %743 = vperm.xlu0 %742, %v272
        %v744 = vpop.permute.xlu0 %743
        %745 = vset.pattern.permute.xlu0 4
        %746 = vperm.xlu0 %745, %v273
        %v747 = vpop.permute.xlu0 %746
        %748 = vset.pattern.permute.xlu0 4
        %749 = vperm.xlu0 %748, %v274
        %v750 = vpop.permute.xlu0 %749
        %751 = vset.pattern.permute.xlu0 4
        %752 = vperm.xlu0 %751, %v275
        %v753 = vpop.permute.xlu0 %752
        %754 = vset.pattern.permute.xlu0 4
        %755 = vperm.xlu0 %754, %v276
        %v756 = vpop.permute.xlu0 %755
        %757 = vset.pattern.permute.xlu0 4
        %758 = vperm.xlu0 %757, %v277
        %v759 = vpop.permute.xlu0 %758
        %760 = vset.pattern.permute.xlu0 4
        %761 = vperm.xlu0 %760, %v278
        %v762 = vpop.permute.xlu0 %761
        %763 = vset.pattern.permute.xlu0 4
        %764 = vperm.xlu0 %763, %v279
        %v765 = vpop.permute.xlu0 %764
        %766 = vset.pattern.permute.xlu0 4
        %767 = vperm.xlu0 %766, %v280
        %v768 = vpop.permute.xlu0 %767
        %769 = vset.pattern.permute.xlu0 4
        %770 = vperm.xlu0 %769, %v281
        %v771 = vpop.permute.xlu0 %770
        %772 = vset.pattern.permute.xlu0 4
        %773 = vperm.xlu0 %772, %v282
        %v774 = vpop.permute.xlu0 %773
        %775 = vset.pattern.permute.xlu0 4
        %776 = vperm.xlu0 %775, %v283
        %v777 = vpop.permute.xlu0 %776
        %778 = vset.pattern.permute.xlu0 4
        %779 = vperm.xlu0 %778, %v284
        %v780 = vpop.permute.xlu0 %779
        %781 = vset.pattern.permute.xlu0 4
        %782 = vperm.xlu0 %781, %v285
        %v783 = vpop.permute.xlu0 %782
        %vm784 = vcmp.eq.s32.totalorder %v738, %v287
        %vm785 = vcmp.eq.s32.totalorder %v741, %v287
        %vm786 = vcmp.eq.s32.totalorder %v744, %v287
        %vm787 = vcmp.eq.s32.totalorder %v747, %v287
        %vm788 = vcmp.eq.s32.totalorder %v750, %v287
        %vm789 = vcmp.eq.s32.totalorder %v753, %v287
        %vm790 = vcmp.eq.s32.totalorder %v756, %v287
        %vm791 = vcmp.eq.s32.totalorder %v759, %v287
        %vm792 = vcmp.eq.s32.totalorder %v762, %v287
        %vm793 = vcmp.eq.s32.totalorder %v765, %v287
        %vm794 = vcmp.eq.s32.totalorder %v768, %v287
        %vm795 = vcmp.eq.s32.totalorder %v771, %v287
        %vm796 = vcmp.eq.s32.totalorder %v774, %v287
        %vm797 = vcmp.eq.s32.totalorder %v777, %v287
        %vm798 = vcmp.eq.s32.totalorder %v780, %v287
        %vm799 = vcmp.eq.s32.totalorder %v783, %v287
        %v800 = vsel %vm784, 1, 0
        %v801 = vsel %vm785, 1, 0
        %v802 = vsel %vm786, 1, 0
        %v803 = vsel %vm787, 1, 0
        %v804 = vsel %vm788, 1, 0
        %v805 = vsel %vm789, 1, 0
        %v806 = vsel %vm790, 1, 0
        %v807 = vsel %vm791, 1, 0
        %v808 = vsel %vm792, 1, 0
        %v809 = vsel %vm793, 1, 0
        %v810 = vsel %vm794, 1, 0
        %v811 = vsel %vm795, 1, 0
        %v812 = vsel %vm796, 1, 0
        %v813 = vsel %vm797, 1, 0
        %v814 = vsel %vm798, 1, 0
        %v815 = vsel %vm799, 1, 0
        %v816 = vcvt.s32.f32 %v800
        %v817 = vcvt.s32.f32 %v801
        %v818 = vcvt.s32.f32 %v802
        %v819 = vcvt.s32.f32 %v803
        %v820 = vcvt.s32.f32 %v804
        %v821 = vcvt.s32.f32 %v805
        %v822 = vcvt.s32.f32 %v806
        %v823 = vcvt.s32.f32 %v807
        %v824 = vcvt.s32.f32 %v808
        %v825 = vcvt.s32.f32 %v809
        %v826 = vcvt.s32.f32 %v810
        %v827 = vcvt.s32.f32 %v811
        %v828 = vcvt.s32.f32 %v812
        %v829 = vcvt.s32.f32 %v813
        %v830 = vcvt.s32.f32 %v814
        %v831 = vcvt.s32.f32 %v815
        %v832 = vadd.f32 %v720, %v816
        %v833 = vadd.f32 %v721, %v817
        %v834 = vadd.f32 %v722, %v818
        %v835 = vadd.f32 %v723, %v819
        %v836 = vadd.f32 %v724, %v820
        %v837 = vadd.f32 %v725, %v821
        %v838 = vadd.f32 %v726, %v822
        %v839 = vadd.f32 %v727, %v823
        %v840 = vadd.f32 %v728, %v824
        %v841 = vadd.f32 %v729, %v825
        %v842 = vadd.f32 %v730, %v826
        %v843 = vadd.f32 %v731, %v827
        %v844 = vadd.f32 %v732, %v828
        %v845 = vadd.f32 %v733, %v829
        %v846 = vadd.f32 %v734, %v830
        %v847 = vadd.f32 %v735, %v831
        %848 = vset.pattern.permute.xlu0 5
        %849 = vperm.xlu0 %848, %v270
        %v850 = vpop.permute.xlu0 %849
        %851 = vset.pattern.permute.xlu0 5
        %852 = vperm.xlu0 %851, %v271
        %v853 = vpop.permute.xlu0 %852
        %854 = vset.pattern.permute.xlu0 5
        %855 = vperm.xlu0 %854, %v272
        %v856 = vpop.permute.xlu0 %855
        %857 = vset.pattern.permute.xlu0 5
        %858 = vperm.xlu0 %857, %v273
        %v859 = vpop.permute.xlu0 %858
        %860 = vset.pattern.permute.xlu0 5
        %861 = vperm.xlu0 %860, %v274
        %v862 = vpop.permute.xlu0 %861
        %863 = vset.pattern.permute.xlu0 5
        %864 = vperm.xlu0 %863, %v275
        %v865 = vpop.permute.xlu0 %864
        %866 = vset.pattern.permute.xlu0 5
        %867 = vperm.xlu0 %866, %v276
        %v868 = vpop.permute.xlu0 %867
        %869 = vset.pattern.permute.xlu0 5
        %870 = vperm.xlu0 %869, %v277
        %v871 = vpop.permute.xlu0 %870
        %872 = vset.pattern.permute.xlu0 5
        %873 = vperm.xlu0 %872, %v278
        %v874 = vpop.permute.xlu0 %873
        %875 = vset.pattern.permute.xlu0 5
        %876 = vperm.xlu0 %875, %v279
        %v877 = vpop.permute.xlu0 %876
        %878 = vset.pattern.permute.xlu0 5
        %879 = vperm.xlu0 %878, %v280
        %v880 = vpop.permute.xlu0 %879
        %881 = vset.pattern.permute.xlu0 5
        %882 = vperm.xlu0 %881, %v281
        %v883 = vpop.permute.xlu0 %882
        %884 = vset.pattern.permute.xlu0 5
        %885 = vperm.xlu0 %884, %v282
        %v886 = vpop.permute.xlu0 %885
        %887 = vset.pattern.permute.xlu0 5
        %888 = vperm.xlu0 %887, %v283
        %v889 = vpop.permute.xlu0 %888
        %890 = vset.pattern.permute.xlu0 5
        %891 = vperm.xlu0 %890, %v284
        %v892 = vpop.permute.xlu0 %891
        %893 = vset.pattern.permute.xlu0 5
        %894 = vperm.xlu0 %893, %v285
        %v895 = vpop.permute.xlu0 %894
        %vm896 = vcmp.eq.s32.totalorder %v850, %v287
        %vm897 = vcmp.eq.s32.totalorder %v853, %v287
        %vm898 = vcmp.eq.s32.totalorder %v856, %v287
        %vm899 = vcmp.eq.s32.totalorder %v859, %v287
        %vm900 = vcmp.eq.s32.totalorder %v862, %v287
        %vm901 = vcmp.eq.s32.totalorder %v865, %v287
        %vm902 = vcmp.eq.s32.totalorder %v868, %v287
        %vm903 = vcmp.eq.s32.totalorder %v871, %v287
        %vm904 = vcmp.eq.s32.totalorder %v874, %v287
        %vm905 = vcmp.eq.s32.totalorder %v877, %v287
        %vm906 = vcmp.eq.s32.totalorder %v880, %v287
        %vm907 = vcmp.eq.s32.totalorder %v883, %v287
        %vm908 = vcmp.eq.s32.totalorder %v886, %v287
        %vm909 = vcmp.eq.s32.totalorder %v889, %v287
        %vm910 = vcmp.eq.s32.totalorder %v892, %v287
        %vm911 = vcmp.eq.s32.totalorder %v895, %v287
        %v912 = vsel %vm896, 1, 0
        %v913 = vsel %vm897, 1, 0
        %v914 = vsel %vm898, 1, 0
        %v915 = vsel %vm899, 1, 0
        %v916 = vsel %vm900, 1, 0
        %v917 = vsel %vm901, 1, 0
        %v918 = vsel %vm902, 1, 0
        %v919 = vsel %vm903, 1, 0
        %v920 = vsel %vm904, 1, 0
        %v921 = vsel %vm905, 1, 0
        %v922 = vsel %vm906, 1, 0
        %v923 = vsel %vm907, 1, 0
        %v924 = vsel %vm908, 1, 0
        %v925 = vsel %vm909, 1, 0
        %v926 = vsel %vm910, 1, 0
        %v927 = vsel %vm911, 1, 0
        %v928 = vcvt.s32.f32 %v912
        %v929 = vcvt.s32.f32 %v913
        %v930 = vcvt.s32.f32 %v914
        %v931 = vcvt.s32.f32 %v915
        %v932 = vcvt.s32.f32 %v916
        %v933 = vcvt.s32.f32 %v917
        %v934 = vcvt.s32.f32 %v918
        %v935 = vcvt.s32.f32 %v919
        %v936 = vcvt.s32.f32 %v920
        %v937 = vcvt.s32.f32 %v921
        %v938 = vcvt.s32.f32 %v922
        %v939 = vcvt.s32.f32 %v923
        %v940 = vcvt.s32.f32 %v924
        %v941 = vcvt.s32.f32 %v925
        %v942 = vcvt.s32.f32 %v926
        %v943 = vcvt.s32.f32 %v927
        %v944 = vadd.f32 %v832, %v928
        %v945 = vadd.f32 %v833, %v929
        %v946 = vadd.f32 %v834, %v930
        %v947 = vadd.f32 %v835, %v931
        %v948 = vadd.f32 %v836, %v932
        %v949 = vadd.f32 %v837, %v933
        %v950 = vadd.f32 %v838, %v934
        %v951 = vadd.f32 %v839, %v935
        %v952 = vadd.f32 %v840, %v936
        %v953 = vadd.f32 %v841, %v937
        %v954 = vadd.f32 %v842, %v938
        %v955 = vadd.f32 %v843, %v939
        %v956 = vadd.f32 %v844, %v940
        %v957 = vadd.f32 %v845, %v941
        %v958 = vadd.f32 %v846, %v942
        %v959 = vadd.f32 %v847, %v943
        %960 = vset.pattern.permute.xlu0 6
        %961 = vperm.xlu0 %960, %v270
        %v962 = vpop.permute.xlu0 %961
        %963 = vset.pattern.permute.xlu0 6
        %964 = vperm.xlu0 %963, %v271
        %v965 = vpop.permute.xlu0 %964
        %966 = vset.pattern.permute.xlu0 6
        %967 = vperm.xlu0 %966, %v272
        %v968 = vpop.permute.xlu0 %967
        %969 = vset.pattern.permute.xlu0 6
        %970 = vperm.xlu0 %969, %v273
        %v971 = vpop.permute.xlu0 %970
        %972 = vset.pattern.permute.xlu0 6
        %973 = vperm.xlu0 %972, %v274
        %v974 = vpop.permute.xlu0 %973
        %975 = vset.pattern.permute.xlu0 6
        %976 = vperm.xlu0 %975, %v275
        %v977 = vpop.permute.xlu0 %976
        %978 = vset.pattern.permute.xlu0 6
        %979 = vperm.xlu0 %978, %v276
        %v980 = vpop.permute.xlu0 %979
        %981 = vset.pattern.permute.xlu0 6
        %982 = vperm.xlu0 %981, %v277
        %v983 = vpop.permute.xlu0 %982
        %984 = vset.pattern.permute.xlu0 6
        %985 = vperm.xlu0 %984, %v278
        %v986 = vpop.permute.xlu0 %985
        %987 = vset.pattern.permute.xlu0 6
        %988 = vperm.xlu0 %987, %v279
        %v989 = vpop.permute.xlu0 %988
        %990 = vset.pattern.permute.xlu0 6
        %991 = vperm.xlu0 %990, %v280
        %v992 = vpop.permute.xlu0 %991
        %993 = vset.pattern.permute.xlu0 6
        %994 = vperm.xlu0 %993, %v281
        %v995 = vpop.permute.xlu0 %994
        %996 = vset.pattern.permute.xlu0 6
        %997 = vperm.xlu0 %996, %v282
        %v998 = vpop.permute.xlu0 %997
        %999 = vset.pattern.permute.xlu0 6
        %1000 = vperm.xlu0 %999, %v283
        %v1001 = vpop.permute.xlu0 %1000
        %1002 = vset.pattern.permute.xlu0 6
        %1003 = vperm.xlu0 %1002, %v284
        %v1004 = vpop.permute.xlu0 %1003
        %1005 = vset.pattern.permute.xlu0 6
        %1006 = vperm.xlu0 %1005, %v285
        %v1007 = vpop.permute.xlu0 %1006
        %vm1008 = vcmp.eq.s32.totalorder %v962, %v287
        %vm1009 = vcmp.eq.s32.totalorder %v965, %v287
        %vm1010 = vcmp.eq.s32.totalorder %v968, %v287
        %vm1011 = vcmp.eq.s32.totalorder %v971, %v287
        %vm1012 = vcmp.eq.s32.totalorder %v974, %v287
        %vm1013 = vcmp.eq.s32.totalorder %v977, %v287
        %vm1014 = vcmp.eq.s32.totalorder %v980, %v287
        %vm1015 = vcmp.eq.s32.totalorder %v983, %v287
        %vm1016 = vcmp.eq.s32.totalorder %v986, %v287
        %vm1017 = vcmp.eq.s32.totalorder %v989, %v287
        %vm1018 = vcmp.eq.s32.totalorder %v992, %v287
        %vm1019 = vcmp.eq.s32.totalorder %v995, %v287
        %vm1020 = vcmp.eq.s32.totalorder %v998, %v287
        %vm1021 = vcmp.eq.s32.totalorder %v1001, %v287
        %vm1022 = vcmp.eq.s32.totalorder %v1004, %v287
        %vm1023 = vcmp.eq.s32.totalorder %v1007, %v287
        %v1024 = vsel %vm1008, 1, 0
        %v1025 = vsel %vm1009, 1, 0
        %v1026 = vsel %vm1010, 1, 0
        %v1027 = vsel %vm1011, 1, 0
        %v1028 = vsel %vm1012, 1, 0
        %v1029 = vsel %vm1013, 1, 0
        %v1030 = vsel %vm1014, 1, 0
        %v1031 = vsel %vm1015, 1, 0
        %v1032 = vsel %vm1016, 1, 0
        %v1033 = vsel %vm1017, 1, 0
        %v1034 = vsel %vm1018, 1, 0
        %v1035 = vsel %vm1019, 1, 0
        %v1036 = vsel %vm1020, 1, 0
        %v1037 = vsel %vm1021, 1, 0
        %v1038 = vsel %vm1022, 1, 0
        %v1039 = vsel %vm1023, 1, 0
        %v1040 = vcvt.s32.f32 %v1024
        %v1041 = vcvt.s32.f32 %v1025
        %v1042 = vcvt.s32.f32 %v1026
        %v1043 = vcvt.s32.f32 %v1027
        %v1044 = vcvt.s32.f32 %v1028
        %v1045 = vcvt.s32.f32 %v1029
        %v1046 = vcvt.s32.f32 %v1030
        %v1047 = vcvt.s32.f32 %v1031
        %v1048 = vcvt.s32.f32 %v1032
        %v1049 = vcvt.s32.f32 %v1033
        %v1050 = vcvt.s32.f32 %v1034
        %v1051 = vcvt.s32.f32 %v1035
        %v1052 = vcvt.s32.f32 %v1036
        %v1053 = vcvt.s32.f32 %v1037
        %v1054 = vcvt.s32.f32 %v1038
        %v1055 = vcvt.s32.f32 %v1039
        %v1056 = vadd.f32 %v944, %v1040
        %v1057 = vadd.f32 %v945, %v1041
        %v1058 = vadd.f32 %v946, %v1042
        %v1059 = vadd.f32 %v947, %v1043
        %v1060 = vadd.f32 %v948, %v1044
        %v1061 = vadd.f32 %v949, %v1045
        %v1062 = vadd.f32 %v950, %v1046
        %v1063 = vadd.f32 %v951, %v1047
        %v1064 = vadd.f32 %v952, %v1048
        %v1065 = vadd.f32 %v953, %v1049
        %v1066 = vadd.f32 %v954, %v1050
        %v1067 = vadd.f32 %v955, %v1051
        %v1068 = vadd.f32 %v956, %v1052
        %v1069 = vadd.f32 %v957, %v1053
        %v1070 = vadd.f32 %v958, %v1054
        %v1071 = vadd.f32 %v959, %v1055
        %1072 = vset.pattern.permute.xlu0 7
        %1073 = vperm.xlu0 %1072, %v270
        %v1074 = vpop.permute.xlu0 %1073
        %1075 = vset.pattern.permute.xlu0 7
        %1076 = vperm.xlu0 %1075, %v271
        %v1077 = vpop.permute.xlu0 %1076
        %1078 = vset.pattern.permute.xlu0 7
        %1079 = vperm.xlu0 %1078, %v272
        %v1080 = vpop.permute.xlu0 %1079
        %1081 = vset.pattern.permute.xlu0 7
        %1082 = vperm.xlu0 %1081, %v273
        %v1083 = vpop.permute.xlu0 %1082
        %1084 = vset.pattern.permute.xlu0 7
        %1085 = vperm.xlu0 %1084, %v274
        %v1086 = vpop.permute.xlu0 %1085
        %1087 = vset.pattern.permute.xlu0 7
        %1088 = vperm.xlu0 %1087, %v275
        %v1089 = vpop.permute.xlu0 %1088
        %1090 = vset.pattern.permute.xlu0 7
        %1091 = vperm.xlu0 %1090, %v276
        %v1092 = vpop.permute.xlu0 %1091
        %1093 = vset.pattern.permute.xlu0 7
        %1094 = vperm.xlu0 %1093, %v277
        %v1095 = vpop.permute.xlu0 %1094
        %1096 = vset.pattern.permute.xlu0 7
        %1097 = vperm.xlu0 %1096, %v278
        %v1098 = vpop.permute.xlu0 %1097
        %1099 = vset.pattern.permute.xlu0 7
        %1100 = vperm.xlu0 %1099, %v279
        %v1101 = vpop.permute.xlu0 %1100
        %1102 = vset.pattern.permute.xlu0 7
        %1103 = vperm.xlu0 %1102, %v280
        %v1104 = vpop.permute.xlu0 %1103
        %1105 = vset.pattern.permute.xlu0 7
        %1106 = vperm.xlu0 %1105, %v281
        %v1107 = vpop.permute.xlu0 %1106
        %1108 = vset.pattern.permute.xlu0 7
        %1109 = vperm.xlu0 %1108, %v282
        %v1110 = vpop.permute.xlu0 %1109
        %1111 = vset.pattern.permute.xlu0 7
        %1112 = vperm.xlu0 %1111, %v283
        %v1113 = vpop.permute.xlu0 %1112
        %1114 = vset.pattern.permute.xlu0 7
        %1115 = vperm.xlu0 %1114, %v284
        %v1116 = vpop.permute.xlu0 %1115
        %1117 = vset.pattern.permute.xlu0 7
        %1118 = vperm.xlu0 %1117, %v285
        %v1119 = vpop.permute.xlu0 %1118
        %vm1120 = vcmp.eq.s32.totalorder %v1074, %v287
        %vm1121 = vcmp.eq.s32.totalorder %v1077, %v287
        %vm1122 = vcmp.eq.s32.totalorder %v1080, %v287
        %vm1123 = vcmp.eq.s32.totalorder %v1083, %v287
        %vm1124 = vcmp.eq.s32.totalorder %v1086, %v287
        %vm1125 = vcmp.eq.s32.totalorder %v1089, %v287
        %vm1126 = vcmp.eq.s32.totalorder %v1092, %v287
        %vm1127 = vcmp.eq.s32.totalorder %v1095, %v287
        %vm1128 = vcmp.eq.s32.totalorder %v1098, %v287
        %vm1129 = vcmp.eq.s32.totalorder %v1101, %v287
        %vm1130 = vcmp.eq.s32.totalorder %v1104, %v287
        %vm1131 = vcmp.eq.s32.totalorder %v1107, %v287
        %vm1132 = vcmp.eq.s32.totalorder %v1110, %v287
        %vm1133 = vcmp.eq.s32.totalorder %v1113, %v287
        %vm1134 = vcmp.eq.s32.totalorder %v1116, %v287
        %vm1135 = vcmp.eq.s32.totalorder %v1119, %v287
        %v1136 = vsel %vm1120, 1, 0
        %v1137 = vsel %vm1121, 1, 0
        %v1138 = vsel %vm1122, 1, 0
        %v1139 = vsel %vm1123, 1, 0
        %v1140 = vsel %vm1124, 1, 0
        %v1141 = vsel %vm1125, 1, 0
        %v1142 = vsel %vm1126, 1, 0
        %v1143 = vsel %vm1127, 1, 0
        %v1144 = vsel %vm1128, 1, 0
        %v1145 = vsel %vm1129, 1, 0
        %v1146 = vsel %vm1130, 1, 0
        %v1147 = vsel %vm1131, 1, 0
        %v1148 = vsel %vm1132, 1, 0
        %v1149 = vsel %vm1133, 1, 0
        %v1150 = vsel %vm1134, 1, 0
        %v1151 = vsel %vm1135, 1, 0
        %v1152 = vcvt.s32.f32 %v1136
        %v1153 = vcvt.s32.f32 %v1137
        %v1154 = vcvt.s32.f32 %v1138
        %v1155 = vcvt.s32.f32 %v1139
        %v1156 = vcvt.s32.f32 %v1140
        %v1157 = vcvt.s32.f32 %v1141
        %v1158 = vcvt.s32.f32 %v1142
        %v1159 = vcvt.s32.f32 %v1143
        %v1160 = vcvt.s32.f32 %v1144
        %v1161 = vcvt.s32.f32 %v1145
        %v1162 = vcvt.s32.f32 %v1146
        %v1163 = vcvt.s32.f32 %v1147
        %v1164 = vcvt.s32.f32 %v1148
        %v1165 = vcvt.s32.f32 %v1149
        %v1166 = vcvt.s32.f32 %v1150
        %v1167 = vcvt.s32.f32 %v1151
        %v1168 = vadd.f32 %v1056, %v1152
        %v1169 = vadd.f32 %v1057, %v1153
        %v1170 = vadd.f32 %v1058, %v1154
        %v1171 = vadd.f32 %v1059, %v1155
        %v1172 = vadd.f32 %v1060, %v1156
        %v1173 = vadd.f32 %v1061, %v1157
        %v1174 = vadd.f32 %v1062, %v1158
        %v1175 = vadd.f32 %v1063, %v1159
        %v1176 = vadd.f32 %v1064, %v1160
        %v1177 = vadd.f32 %v1065, %v1161
        %v1178 = vadd.f32 %v1066, %v1162
        %v1179 = vadd.f32 %v1067, %v1163
        %v1180 = vadd.f32 %v1068, %v1164
        %v1181 = vadd.f32 %v1069, %v1165
        %v1182 = vadd.f32 %v1070, %v1166
        %v1183 = vadd.f32 %v1071, %v1167
        %v1184 = vld [vmem:[%s1] sm:$0xff]
        %v1185 = vld [vmem:[%s1 + $0x8] sm:$0xff]
        %v1186 = vld [vmem:[%s1 + $0x10] sm:$0xff]
        %v1187 = vld [vmem:[%s1 + $0x18] sm:$0xff]
        %v1188 = vld [vmem:[%s1 + $0x20] sm:$0xff]
        %v1189 = vld [vmem:[%s1 + $0x28] sm:$0xff]
        %v1190 = vld [vmem:[%s1 + $0x30] sm:$0xff]
        %v1191 = vld [vmem:[%s1 + $0x38] sm:$0xff]
        %v1192 = vld [vmem:[%s1 + $0x40] sm:$0xff]
        %v1193 = vld [vmem:[%s1 + $0x48] sm:$0xff]
        %v1194 = vld [vmem:[%s1 + $0x50] sm:$0xff]
        %v1195 = vld [vmem:[%s1 + $0x58] sm:$0xff]
        %v1196 = vld [vmem:[%s1 + $0x60] sm:$0xff]
        %v1197 = vld [vmem:[%s1 + $0x68] sm:$0xff]
        %v1198 = vld [vmem:[%s1 + $0x70] sm:$0xff]
        %v1199 = vld [vmem:[%s1 + $0x78] sm:$0xff]
        %1200 = vmatpush.msra.mxu0 %v1199
        %1201 = vmatpush.msra.mxu0 %v1198
        %1202 = vmatpush.msra.mxu0 %v1197
        %1203 = vmatpush.msra.mxu0 %v1196
        %1204 = vmatpush.msra.mxu0 %v1195
        %1205 = vmatpush.msra.mxu0 %v1194
        %1206 = vmatpush.msra.mxu0 %v1193
        %1207 = vmatpush.msra.mxu0 %v1192
        %1208 = vmatpush.msra.mxu0 %v1191
        %1209 = vmatpush.msra.mxu0 %v1190
        %1210 = vmatpush.msra.mxu0 %v1189
        %1211 = vmatpush.msra.mxu0 %v1188
        %1212 = vmatpush.msra.mxu0 %v1187
        %1213 = vmatpush.msra.mxu0 %v1186
        %1214 = vmatpush.msra.mxu0 %v1185
        %1215 = vmatpush.msra.mxu0 %v1184
        %1216 = vmatmul.f32.gmra.mxu0 %v1168
        %v1217 = vpop.f32.mrf.mxu0
        %v1218 = vadd.f32 0.0, %v1217
        %1219 = vmatmul.f32.gmra.mxu0 %v1169
        %v1220 = vpop.f32.mrf.mxu0
        %v1221 = vadd.f32 0.0, %v1220
        %1222 = vmatmul.f32.gmra.mxu0 %v1170
        %v1223 = vpop.f32.mrf.mxu0
        %v1224 = vadd.f32 0.0, %v1223
        %1225 = vmatmul.f32.gmra.mxu0 %v1171
        %v1226 = vpop.f32.mrf.mxu0
        %v1227 = vadd.f32 0.0, %v1226
        %1228 = vmatmul.f32.gmra.mxu0 %v1172
        %v1229 = vpop.f32.mrf.mxu0
        %v1230 = vadd.f32 0.0, %v1229
        %1231 = vmatmul.f32.gmra.mxu0 %v1173
        %v1232 = vpop.f32.mrf.mxu0
        %v1233 = vadd.f32 0.0, %v1232
        %1234 = vmatmul.f32.gmra.mxu0 %v1174
        %v1235 = vpop.f32.mrf.mxu0
        %v1236 = vadd.f32 0.0, %v1235
        %1237 = vmatmul.f32.gmra.mxu0 %v1175
        %v1238 = vpop.f32.mrf.mxu0
        %v1239 = vadd.f32 0.0, %v1238
        %1240 = vmatmul.f32.gmra.mxu0 %v1176
        %v1241 = vpop.f32.mrf.mxu0
        %v1242 = vadd.f32 0.0, %v1241
        %1243 = vmatmul.f32.gmra.mxu0 %v1177
        %v1244 = vpop.f32.mrf.mxu0
        %v1245 = vadd.f32 0.0, %v1244
        %1246 = vmatmul.f32.gmra.mxu0 %v1178
        %v1247 = vpop.f32.mrf.mxu0
        %v1248 = vadd.f32 0.0, %v1247
        %1249 = vmatmul.f32.gmra.mxu0 %v1179
        %v1250 = vpop.f32.mrf.mxu0
        %v1251 = vadd.f32 0.0, %v1250
        %1252 = vmatmul.f32.gmra.mxu0 %v1180
        %v1253 = vpop.f32.mrf.mxu0
        %v1254 = vadd.f32 0.0, %v1253
        %1255 = vmatmul.f32.gmra.mxu0 %v1181
        %v1256 = vpop.f32.mrf.mxu0
        %v1257 = vadd.f32 0.0, %v1256
        %1258 = vmatmul.f32.gmra.mxu0 %v1182
        %v1259 = vpop.f32.mrf.mxu0
        %v1260 = vadd.f32 0.0, %v1259
        %1261 = vmatmul.f32.gmra.mxu0 %v1183
        %v1262 = vpop.f32.mrf.mxu0
        %v1263 = vadd.f32 0.0, %v1262
        %1264 = vdwg.mxu0
        %v1265 = vmul.f32 %v1218, 0.125
        %v1266 = vmul.f32 %v1221, 0.125
        %v1267 = vmul.f32 %v1224, 0.125
        %v1268 = vmul.f32 %v1227, 0.125
        %v1269 = vmul.f32 %v1230, 0.125
        %v1270 = vmul.f32 %v1233, 0.125
        %v1271 = vmul.f32 %v1236, 0.125
        %v1272 = vmul.f32 %v1239, 0.125
        %v1273 = vmul.f32 %v1242, 0.125
        %v1274 = vmul.f32 %v1245, 0.125
        %v1275 = vmul.f32 %v1248, 0.125
        %v1276 = vmul.f32 %v1251, 0.125
        %v1277 = vmul.f32 %v1254, 0.125
        %v1278 = vmul.f32 %v1257, 0.125
        %v1279 = vmul.f32 %v1260, 0.125
        %v1280 = vmul.f32 %v1263, 0.125
        %v1281 = vld [vmem:[%s2] sm:$0xff]
        %v1282 = vld [vmem:[%s2 + $0x8] sm:$0xff]
        %v1283 = vld [vmem:[%s2 + $0x10] sm:$0xff]
        %v1284 = vld [vmem:[%s2 + $0x18] sm:$0xff]
        %v1285 = vld [vmem:[%s2 + $0x20] sm:$0xff]
        %v1286 = vld [vmem:[%s2 + $0x28] sm:$0xff]
        %v1287 = vld [vmem:[%s2 + $0x30] sm:$0xff]
        %v1288 = vld [vmem:[%s2 + $0x38] sm:$0xff]
        %v1289 = vld [vmem:[%s2 + $0x40] sm:$0xff]
        %v1290 = vld [vmem:[%s2 + $0x48] sm:$0xff]
        %v1291 = vld [vmem:[%s2 + $0x50] sm:$0xff]
        %v1292 = vld [vmem:[%s2 + $0x58] sm:$0xff]
        %v1293 = vld [vmem:[%s2 + $0x60] sm:$0xff]
        %v1294 = vld [vmem:[%s2 + $0x68] sm:$0xff]
        %v1295 = vld [vmem:[%s2 + $0x70] sm:$0xff]
        %v1296 = vld [vmem:[%s2 + $0x78] sm:$0xff]
        %v1297 = vld [vmem:[%s3] sm:$0x1]
        %v1299 = vperm.slane %v1297, 0
        %1301 = vmatpush.msra.mxu0 %v1296
        %1302 = vmatpush.msra.mxu0 %v1295
        %1303 = vmatpush.msra.mxu0 %v1294
        %1304 = vmatpush.msra.mxu0 %v1293
        %1305 = vmatpush.msra.mxu0 %v1292
        %1306 = vmatpush.msra.mxu0 %v1291
        %1307 = vmatpush.msra.mxu0 %v1290
        %1308 = vmatpush.msra.mxu0 %v1289
        %1309 = vmatpush.msra.mxu0 %v1288
        %1310 = vmatpush.msra.mxu0 %v1287
        %1311 = vmatpush.msra.mxu0 %v1286
        %1312 = vmatpush.msra.mxu0 %v1285
        %1313 = vmatpush.msra.mxu0 %v1284
        %1314 = vmatpush.msra.mxu0 %v1283
        %1315 = vmatpush.msra.mxu0 %v1282
        %1316 = vmatpush.msra.mxu0 %v1281
        %1317 = vmatmul.f32.gmra.mxu0 %v1265
        %v1318 = vpop.f32.mrf.mxu0
        %v1319 = vadd.f32 %v1299, %v1318
        %1320 = vmatmul.f32.gmra.mxu0 %v1266
        %v1321 = vpop.f32.mrf.mxu0
        %v1322 = vadd.f32 %v1299, %v1321
        %1323 = vmatmul.f32.gmra.mxu0 %v1267
        %v1324 = vpop.f32.mrf.mxu0
        %v1325 = vadd.f32 %v1299, %v1324
        %1326 = vmatmul.f32.gmra.mxu0 %v1268
        %v1327 = vpop.f32.mrf.mxu0
        %v1328 = vadd.f32 %v1299, %v1327
        %1329 = vmatmul.f32.gmra.mxu0 %v1269
        %v1330 = vpop.f32.mrf.mxu0
        %v1331 = vadd.f32 %v1299, %v1330
        %1332 = vmatmul.f32.gmra.mxu0 %v1270
        %v1333 = vpop.f32.mrf.mxu0
        %v1334 = vadd.f32 %v1299, %v1333
        %1335 = vmatmul.f32.gmra.mxu0 %v1271
        %v1336 = vpop.f32.mrf.mxu0
        %v1337 = vadd.f32 %v1299, %v1336
        %1338 = vmatmul.f32.gmra.mxu0 %v1272
        %v1339 = vpop.f32.mrf.mxu0
        %v1340 = vadd.f32 %v1299, %v1339
        %1341 = vmatmul.f32.gmra.mxu0 %v1273
        %v1342 = vpop.f32.mrf.mxu0
        %v1343 = vadd.f32 %v1299, %v1342
        %1344 = vmatmul.f32.gmra.mxu0 %v1274
        %v1345 = vpop.f32.mrf.mxu0
        %v1346 = vadd.f32 %v1299, %v1345
        %1347 = vmatmul.f32.gmra.mxu0 %v1275
        %v1348 = vpop.f32.mrf.mxu0
        %v1349 = vadd.f32 %v1299, %v1348
        %1350 = vmatmul.f32.gmra.mxu0 %v1276
        %v1351 = vpop.f32.mrf.mxu0
        %v1352 = vadd.f32 %v1299, %v1351
        %1353 = vmatmul.f32.gmra.mxu0 %v1277
        %v1354 = vpop.f32.mrf.mxu0
        %v1355 = vadd.f32 %v1299, %v1354
        %1356 = vmatmul.f32.gmra.mxu0 %v1278
        %v1357 = vpop.f32.mrf.mxu0
        %v1358 = vadd.f32 %v1299, %v1357
        %1359 = vmatmul.f32.gmra.mxu0 %v1279
        %v1360 = vpop.f32.mrf.mxu0
        %v1361 = vadd.f32 %v1299, %v1360
        %1362 = vmatmul.f32.gmra.mxu0 %v1280
        %v1363 = vpop.f32.mrf.mxu0
        %v1364 = vadd.f32 %v1299, %v1363
        %1365 = vdwg.mxu0
        %v1366 = vmax.f32 %v1319, 0.0
        %v1367 = vmax.f32 %v1322, 0.0
        %v1368 = vmax.f32 %v1325, 0.0
        %v1369 = vmax.f32 %v1328, 0.0
        %v1370 = vmax.f32 %v1331, 0.0
        %v1371 = vmax.f32 %v1334, 0.0
        %v1372 = vmax.f32 %v1337, 0.0
        %v1373 = vmax.f32 %v1340, 0.0
        %v1374 = vmax.f32 %v1343, 0.0
        %v1375 = vmax.f32 %v1346, 0.0
        %v1376 = vmax.f32 %v1349, 0.0
        %v1377 = vmax.f32 %v1352, 0.0
        %v1378 = vmax.f32 %v1355, 0.0
        %v1379 = vmax.f32 %v1358, 0.0
        %v1380 = vmax.f32 %v1361, 0.0
        %v1381 = vmax.f32 %v1364, 0.0
        %v1382 = vld [vmem:[#allocation2] sm:$0xff]
        %v1383 = vld [vmem:[#allocation2 + $0x8] sm:$0xff]
        %v1384 = vld [vmem:[#allocation2 + $0x10] sm:$0xff]
        %v1385 = vld [vmem:[#allocation2 + $0x18] sm:$0xff]
        %v1386 = vld [vmem:[#allocation2 + $0x20] sm:$0xff]
        %v1387 = vld [vmem:[#allocation2 + $0x28] sm:$0xff]
        %v1388 = vld [vmem:[#allocation2 + $0x30] sm:$0xff]
        %v1389 = vld [vmem:[#allocation2 + $0x38] sm:$0xff]
        %v1390 = vld [vmem:[#allocation2 + $0x40] sm:$0xff]
        %v1391 = vld [vmem:[#allocation2 + $0x48] sm:$0xff]
        %v1392 = vld [vmem:[#allocation2 + $0x50] sm:$0xff]
        %v1393 = vld [vmem:[#allocation2 + $0x58] sm:$0xff]
        %v1394 = vld [vmem:[#allocation2 + $0x60] sm:$0xff]
        %v1395 = vld [vmem:[#allocation2 + $0x68] sm:$0xff]
        %v1396 = vld [vmem:[#allocation2 + $0x70] sm:$0xff]
        %v1397 = vld [vmem:[#allocation2 + $0x78] sm:$0xff]
        %v1398 = vld [vmem:[%s5] sm:$0x1]
        %v1400 = vperm.slane %v1398, 0
        %1402 = vmatpush.msra.mxu0 %v1397
        %1403 = vmatpush.msra.mxu0 %v1396
        %1404 = vmatpush.msra.mxu0 %v1395
        %1405 = vmatpush.msra.mxu0 %v1394
        %1406 = vmatpush.msra.mxu0 %v1393
        %1407 = vmatpush.msra.mxu0 %v1392
        %1408 = vmatpush.msra.mxu0 %v1391
        %1409 = vmatpush.msra.mxu0 %v1390
        %1410 = vmatpush.msra.mxu0 %v1389
        %1411 = vmatpush.msra.mxu0 %v1388
        %1412 = vmatpush.msra.mxu0 %v1387
        %1413 = vmatpush.msra.mxu0 %v1386
        %1414 = vmatpush.msra.mxu0 %v1385
        %1415 = vmatpush.msra.mxu0 %v1384
        %1416 = vmatpush.msra.mxu0 %v1383
        %1417 = vmatpush.msra.mxu0 %v1382
        %1418 = vmatmul.f32.gmra.mxu0 %v1366
        %v1419 = vpop.f32.mrf.mxu0
        %v1420 = vadd.f32 %v1400, %v1419
        %1421 = vmatmul.f32.gmra.mxu0 %v1367
        %v1422 = vpop.f32.mrf.mxu0
        %v1423 = vadd.f32 %v1400, %v1422
        %1424 = vmatmul.f32.gmra.mxu0 %v1368
        %v1425 = vpop.f32.mrf.mxu0
        %v1426 = vadd.f32 %v1400, %v1425
        %1427 = vmatmul.f32.gmra.mxu0 %v1369
        %v1428 = vpop.f32.mrf.mxu0
        %v1429 = vadd.f32 %v1400, %v1428
        %1430 = vmatmul.f32.gmra.mxu0 %v1370
        %v1431 = vpop.f32.mrf.mxu0
        %v1432 = vadd.f32 %v1400, %v1431
        %1433 = vmatmul.f32.gmra.mxu0 %v1371
        %v1434 = vpop.f32.mrf.mxu0
        %v1435 = vadd.f32 %v1400, %v1434
        %1436 = vmatmul.f32.gmra.mxu0 %v1372
        %v1437 = vpop.f32.mrf.mxu0
        %v1438 = vadd.f32 %v1400, %v1437
        %1439 = vmatmul.f32.gmra.mxu0 %v1373
        %v1440 = vpop.f32.mrf.mxu0
        %v1441 = vadd.f32 %v1400, %v1440
        %1442 = vmatmul.f32.gmra.mxu0 %v1374
        %v1443 = vpop.f32.mrf.mxu0
        %v1444 = vadd.f32 %v1400, %v1443
        %1445 = vmatmul.f32.gmra.mxu0 %v1375
        %v1446 = vpop.f32.mrf.mxu0
        %v1447 = vadd.f32 %v1400, %v1446
        %1448 = vmatmul.f32.gmra.mxu0 %v1376
        %v1449 = vpop.f32.mrf.mxu0
        %v1450 = vadd.f32 %v1400, %v1449
        %1451 = vmatmul.f32.gmra.mxu0 %v1377
        %v1452 = vpop.f32.mrf.mxu0
        %v1453 = vadd.f32 %v1400, %v1452
        %1454 = vmatmul.f32.gmra.mxu0 %v1378
        %v1455 = vpop.f32.mrf.mxu0
        %v1456 = vadd.f32 %v1400, %v1455
        %1457 = vmatmul.f32.gmra.mxu0 %v1379
        %v1458 = vpop.f32.mrf.mxu0
        %v1459 = vadd.f32 %v1400, %v1458
        %1460 = vmatmul.f32.gmra.mxu0 %v1380
        %v1461 = vpop.f32.mrf.mxu0
        %v1462 = vadd.f32 %v1400, %v1461
        %1463 = vmatmul.f32.gmra.mxu0 %v1381
        %v1464 = vpop.f32.mrf.mxu0
        %v1465 = vadd.f32 %v1400, %v1464
        %1466 = vdwg.mxu0
        %vm1467 = vcmp.lt.s32.totalorder %v287, 8
        %v1468 = vsel %vm1467, %v1420, -1e+30
        %v1469 = vsel %vm1467, %v1423, -1e+30
        %v1470 = vsel %vm1467, %v1426, -1e+30
        %v1471 = vsel %vm1467, %v1429, -1e+30
        %v1472 = vsel %vm1467, %v1432, -1e+30
        %v1473 = vsel %vm1467, %v1435, -1e+30
        %v1474 = vsel %vm1467, %v1438, -1e+30
        %v1475 = vsel %vm1467, %v1441, -1e+30
        %v1476 = vsel %vm1467, %v1444, -1e+30
        %v1477 = vsel %vm1467, %v1447, -1e+30
        %v1478 = vsel %vm1467, %v1450, -1e+30
        %v1479 = vsel %vm1467, %v1453, -1e+30
        %v1480 = vsel %vm1467, %v1456, -1e+30
        %v1481 = vsel %vm1467, %v1459, -1e+30
        %v1482 = vsel %vm1467, %v1462, -1e+30
        %v1483 = vsel %vm1467, %v1465, -1e+30
        %1484 = vmax.xlane.f32.xlu0 %v1468
        %v1485 = vpop.xlane.xlu0 %1484
        %1486 = vmax.xlane.f32.xlu0 %v1469
        %v1487 = vpop.xlane.xlu0 %1486
        %1488 = vmax.xlane.f32.xlu0 %v1470
        %v1489 = vpop.xlane.xlu0 %1488
        %1490 = vmax.xlane.f32.xlu0 %v1471
        %v1491 = vpop.xlane.xlu0 %1490
        %1492 = vmax.xlane.f32.xlu0 %v1472
        %v1493 = vpop.xlane.xlu0 %1492
        %1494 = vmax.xlane.f32.xlu0 %v1473
        %v1495 = vpop.xlane.xlu0 %1494
        %1496 = vmax.xlane.f32.xlu0 %v1474
        %v1497 = vpop.xlane.xlu0 %1496
        %1498 = vmax.xlane.f32.xlu0 %v1475
        %v1499 = vpop.xlane.xlu0 %1498
        %1500 = vmax.xlane.f32.xlu0 %v1476
        %v1501 = vpop.xlane.xlu0 %1500
        %1502 = vmax.xlane.f32.xlu0 %v1477
        %v1503 = vpop.xlane.xlu0 %1502
        %1504 = vmax.xlane.f32.xlu0 %v1478
        %v1505 = vpop.xlane.xlu0 %1504
        %1506 = vmax.xlane.f32.xlu0 %v1479
        %v1507 = vpop.xlane.xlu0 %1506
        %1508 = vmax.xlane.f32.xlu0 %v1480
        %v1509 = vpop.xlane.xlu0 %1508
        %1510 = vmax.xlane.f32.xlu0 %v1481
        %v1511 = vpop.xlane.xlu0 %1510
        %1512 = vmax.xlane.f32.xlu0 %v1482
        %v1513 = vpop.xlane.xlu0 %1512
        %1514 = vmax.xlane.f32.xlu0 %v1483
        %v1515 = vpop.xlane.xlu0 %1514
        %v1516 = vsub.f32 %v1468, %v1485
        %v1517 = vsub.f32 %v1469, %v1487
        %v1518 = vsub.f32 %v1470, %v1489
        %v1519 = vsub.f32 %v1471, %v1491
        %v1520 = vsub.f32 %v1472, %v1493
        %v1521 = vsub.f32 %v1473, %v1495
        %v1522 = vsub.f32 %v1474, %v1497
        %v1523 = vsub.f32 %v1475, %v1499
        %v1524 = vsub.f32 %v1476, %v1501
        %v1525 = vsub.f32 %v1477, %v1503
        %v1526 = vsub.f32 %v1478, %v1505
        %v1527 = vsub.f32 %v1479, %v1507
        %v1528 = vsub.f32 %v1480, %v1509
        %v1529 = vsub.f32 %v1481, %v1511
        %v1530 = vsub.f32 %v1482, %v1513
        %v1531 = vsub.f32 %v1483, %v1515
        %v1532 = vmul.f32 %v1516, 1.442695
        %v1533 = vpow.pop %v1532
        %v1534 = vmul.f32 %v1517, 1.442695
        %v1535 = vpow.pop %v1534
        %v1536 = vmul.f32 %v1518, 1.442695
        %v1537 = vpow.pop %v1536
        %v1538 = vmul.f32 %v1519, 1.442695
        %v1539 = vpow.pop %v1538
        %v1540 = vmul.f32 %v1520, 1.442695
        %v1541 = vpow.pop %v1540
        %v1542 = vmul.f32 %v1521, 1.442695
        %v1543 = vpow.pop %v1542
        %v1544 = vmul.f32 %v1522, 1.442695
        %v1545 = vpow.pop %v1544
        %v1546 = vmul.f32 %v1523, 1.442695
        %v1547 = vpow.pop %v1546
        %v1548 = vmul.f32 %v1524, 1.442695
        %v1549 = vpow.pop %v1548
        %v1550 = vmul.f32 %v1525, 1.442695
        %v1551 = vpow.pop %v1550
        %v1552 = vmul.f32 %v1526, 1.442695
        %v1553 = vpow.pop %v1552
        %v1554 = vmul.f32 %v1527, 1.442695
        %v1555 = vpow.pop %v1554
        %v1556 = vmul.f32 %v1528, 1.442695
        %v1557 = vpow.pop %v1556
        %v1558 = vmul.f32 %v1529, 1.442695
        %v1559 = vpow.pop %v1558
        %v1560 = vmul.f32 %v1530, 1.442695
        %v1561 = vpow.pop %v1560
        %v1562 = vmul.f32 %v1531, 1.442695
        %v1563 = vpow.pop %v1562
        %1564 = vadd.xlane.f32.xlu0 %v1533
        %v1565 = vpop.xlane.xlu0 %1564
        %1566 = vadd.xlane.f32.xlu0 %v1535
        %v1567 = vpop.xlane.xlu0 %1566
        %1568 = vadd.xlane.f32.xlu0 %v1537
        %v1569 = vpop.xlane.xlu0 %1568
        %1570 = vadd.xlane.f32.xlu0 %v1539
        %v1571 = vpop.xlane.xlu0 %1570
        %1572 = vadd.xlane.f32.xlu0 %v1541
        %v1573 = vpop.xlane.xlu0 %1572
        %1574 = vadd.xlane.f32.xlu0 %v1543
        %v1575 = vpop.xlane.xlu0 %1574
        %1576 = vadd.xlane.f32.xlu0 %v1545
        %v1577 = vpop.xlane.xlu0 %1576
        %1578 = vadd.xlane.f32.xlu0 %v1547
        %v1579 = vpop.xlane.xlu0 %1578
        %1580 = vadd.xlane.f32.xlu0 %v1549
        %v1581 = vpop.xlane.xlu0 %1580
        %1582 = vadd.xlane.f32.xlu0 %v1551
        %v1583 = vpop.xlane.xlu0 %1582
        %1584 = vadd.xlane.f32.xlu0 %v1553
        %v1585 = vpop.xlane.xlu0 %1584
        %1586 = vadd.xlane.f32.xlu0 %v1555
        %v1587 = vpop.xlane.xlu0 %1586
        %1588 = vadd.xlane.f32.xlu0 %v1557
        %v1589 = vpop.xlane.xlu0 %1588
        %1590 = vadd.xlane.f32.xlu0 %v1559
        %v1591 = vpop.xlane.xlu0 %1590
        %1592 = vadd.xlane.f32.xlu0 %v1561
        %v1593 = vpop.xlane.xlu0 %1592
        %1594 = vadd.xlane.f32.xlu0 %v1563
        %v1595 = vpop.xlane.xlu0 %1594
        %v1596 = vlog2.pop %v1565
        %v1597 = vmul.f32 %v1596, 0.6931472
        %v1598 = vlog2.pop %v1567
        %v1599 = vmul.f32 %v1598, 0.6931472
        %v1600 = vlog2.pop %v1569
        %v1601 = vmul.f32 %v1600, 0.6931472
        %v1602 = vlog2.pop %v1571
        %v1603 = vmul.f32 %v1602, 0.6931472
        %v1604 = vlog2.pop %v1573
        %v1605 = vmul.f32 %v1604, 0.6931472
        %v1606 = vlog2.pop %v1575
        %v1607 = vmul.f32 %v1606, 0.6931472
        %v1608 = vlog2.pop %v1577
        %v1609 = vmul.f32 %v1608, 0.6931472
        %v1610 = vlog2.pop %v1579
        %v1611 = vmul.f32 %v1610, 0.6931472
        %v1612 = vlog2.pop %v1581
        %v1613 = vmul.f32 %v1612, 0.6931472
        %v1614 = vlog2.pop %v1583
        %v1615 = vmul.f32 %v1614, 0.6931472
        %v1616 = vlog2.pop %v1585
        %v1617 = vmul.f32 %v1616, 0.6931472
        %v1618 = vlog2.pop %v1587
        %v1619 = vmul.f32 %v1618, 0.6931472
        %v1620 = vlog2.pop %v1589
        %v1621 = vmul.f32 %v1620, 0.6931472
        %v1622 = vlog2.pop %v1591
        %v1623 = vmul.f32 %v1622, 0.6931472
        %v1624 = vlog2.pop %v1593
        %v1625 = vmul.f32 %v1624, 0.6931472
        %v1626 = vlog2.pop %v1595
        %v1627 = vmul.f32 %v1626, 0.6931472
        %v1628 = vadd.f32 %v1597, %v1485
        %v1629 = vadd.f32 %v1599, %v1487
        %v1630 = vadd.f32 %v1601, %v1489
        %v1631 = vadd.f32 %v1603, %v1491
        %v1632 = vadd.f32 %v1605, %v1493
        %v1633 = vadd.f32 %v1607, %v1495
        %v1634 = vadd.f32 %v1609, %v1497
        %v1635 = vadd.f32 %v1611, %v1499
        %v1636 = vadd.f32 %v1613, %v1501
        %v1637 = vadd.f32 %v1615, %v1503
        %v1638 = vadd.f32 %v1617, %v1505
        %v1639 = vadd.f32 %v1619, %v1507
        %v1640 = vadd.f32 %v1621, %v1509
        %v1641 = vadd.f32 %v1623, %v1511
        %v1642 = vadd.f32 %v1625, %v1513
        %v1643 = vadd.f32 %v1627, %v1515
        %v1644 = vsub.f32 %v1468, %v1628
        %v1645 = vsub.f32 %v1469, %v1629
        %v1646 = vsub.f32 %v1470, %v1630
        %v1647 = vsub.f32 %v1471, %v1631
        %v1648 = vsub.f32 %v1472, %v1632
        %v1649 = vsub.f32 %v1473, %v1633
        %v1650 = vsub.f32 %v1474, %v1634
        %v1651 = vsub.f32 %v1475, %v1635
        %v1652 = vsub.f32 %v1476, %v1636
        %v1653 = vsub.f32 %v1477, %v1637
        %v1654 = vsub.f32 %v1478, %v1638
        %v1655 = vsub.f32 %v1479, %v1639
        %v1656 = vsub.f32 %v1480, %v1640
        %v1657 = vsub.f32 %v1481, %v1641
        %v1658 = vsub.f32 %v1482, %v1642
        %v1659 = vsub.f32 %v1483, %v1643
        %1660 = vst [vmem:[%s262] sm:$0xff] %v1644
        %1661 = vst [vmem:[%s262 + $0x8] sm:$0xff] %v1645
        %1662 = vst [vmem:[%s262 + $0x10] sm:$0xff] %v1646
        %1663 = vst [vmem:[%s262 + $0x18] sm:$0xff] %v1647
        %1664 = vst [vmem:[%s262 + $0x20] sm:$0xff] %v1648
        %1665 = vst [vmem:[%s262 + $0x28] sm:$0xff] %v1649
        %1666 = vst [vmem:[%s262 + $0x30] sm:$0xff] %v1650
        %1667 = vst [vmem:[%s262 + $0x38] sm:$0xff] %v1651
        %1668 = vst [vmem:[%s262 + $0x40] sm:$0xff] %v1652
        %1669 = vst [vmem:[%s262 + $0x48] sm:$0xff] %v1653
        %1670 = vst [vmem:[%s262 + $0x50] sm:$0xff] %v1654
        %1671 = vst [vmem:[%s262 + $0x58] sm:$0xff] %v1655
        %1672 = vst [vmem:[%s262 + $0x60] sm:$0xff] %v1656
        %1673 = vst [vmem:[%s262 + $0x68] sm:$0xff] %v1657
        %1674 = vst [vmem:[%s262 + $0x70] sm:$0xff] %v1658
        %1675 = vst [vmem:[%s262 + $0x78] sm:$0xff] %v1659
        %s1676 = sand.u32 %s160, 1
        %s1677 = scalar_lea.sflag [#allocation4], %s1676
        %s1678 = sand.u32 %s160, 1
        %s1679 = smul.addr %s1678, 128
        %s1680 = scalar_lea.vmem [#allocation5], %s1679
        // Predicated region
        $region49: #{tpu_custom_call.1} parent=43 // pred_check
          %p1681 = pneg %p170
        $region50: #{tpu_custom_call.1} parent=43 // pred_check_branch
          %1683 = sbr.rel (%p1681) target = $region52
        $region51: #{tpu_custom_call.1} parent=43 // pred_region
          %s1684 = smul.u32 16, %s21
          %1686 = vsyncadd %s1677, 0
          %s1687 = smul.addr %s1684, 8
          %s1688 = scalar_lea.hbm %s6, %s1687
          %s1689 = sshll.u32 %s1680, 4
          %s1690 = int_to_ptr.vmem [resolvable:$true] %s1689
          %s1691 = sshll.u32 %s1688, 4
          %s1692 = int_to_ptr.hbm [resolvable:$true] %s1691
          %1697 = dma.vmem_to_hbm [thread:$0]  %s1690, 2048, %s1692, %s1677, 128, 128, 8
        $region52: #{tpu_custom_call.1} parent=43 // pred_fallthru
          _
      $region44: #{tpu_custom_call.1} parent=5 // pred_fallthru
        _
      %p1698 = scmp.le.s32.totalorder 2, %s16
      // Predicated region
      $region53: #{tpu_custom_call.1} parent=5 // pred_check
        %p1699 = pneg %p1698
      $region54: #{tpu_custom_call.1} parent=5 // pred_check_branch
        %1701 = sbr.rel (%p1699) target = $region56
      $region55: #{tpu_custom_call.1} parent=5 // pred_region
        %s1702 = ssub.s32 %s16, 2
        // Predicated region
        $region57: #{tpu_custom_call.1} parent=55 // pred_check
          %p1703 = pneg %p176
        $region58: #{tpu_custom_call.1} parent=55 // pred_check_branch
          %1705 = sbr.rel (%p1703) target = $region60
        $region59: #{tpu_custom_call.1} parent=55 // pred_region
          %s1706 = sand.u32 %s161, 1
          %s1707 = scalar_lea.sflag [#allocation4], %s1706
          %s1708 = sand.u32 %s161, 1
          %s1709 = smul.addr %s1708, 128
          %s1710 = scalar_lea.vmem [#allocation5], %s1709
          %1712 = dma.done %s1707, 2048
        $region60: #{tpu_custom_call.1} parent=55 // pred_fallthru
          _
      $region56: #{tpu_custom_call.1} parent=5 // pred_fallthru
        _
    $region6: #{tpu_custom_call.1} parent=1 // loop_footer
      %s20 = sadd.s32 1, %s16
    $region7: #{tpu_custom_call.1} parent=1 // loop_footer_branch
      %15 = sbr.rel target = $region3
    $region8: #{tpu_custom_call.1} parent=1 // loop_exit
      _
    %1713 = vsyncpa [#allocation3], 1
    %s1714 = scalar_lea.sflag [#allocation3], 1
    %1715 = vsyncpa %s1714, 1
    %1716 = vsyncpa [#allocation4], 1
    %s1717 = scalar_lea.sflag [#allocation4], 1
    %1718 = vsyncpa %s1717, 1

</llo_original>
